<compile_context>
chip_gen: v5e
topology: v5e:2x2
jax: 0.10.0
libtpu: 0.0.40
codegen_flags: <defaults>
</compile_context>

<pallas_src>
import jax
import jax.numpy as jnp
from jax.experimental import pallas as pl
from jax.experimental.pallas import tpu as pltpu


def _leaky_relu(x, slope=0.2):
    return jnp.where(x > 0, x, slope * x)


def _round_up(n, m):
    return ((n + m - 1) // m) * m


def mlp_kernel(x_ref,
               w1_ref, b1_ref,
               w2_ref, b2_ref,
               w3_ref, b3_ref,
               w4_ref, b4_ref,
               o_ref):
    """Whole 4-layer MLP for one (bm, in_dim) batch tile.

    Matmul inputs are bf16 (2x MXU throughput, half the weight DMA bytes);
    accumulation, bias adds and LeakyReLU stay in f32.  The f32 x tile is cast
    to bf16 here so no padded/cast copy of x is ever written back to HBM.
    """
    # Layer 1: (bm, in_dim) @ (in_dim, 512)
    x = x_ref[...].astype(jnp.bfloat16)
    h = jnp.dot(x, w1_ref[...], preferred_element_type=jnp.float32)
    h = _leaky_relu(h + b1_ref[...])

    # Layer 2: (bm, 512) @ (512, 512)
    h = jnp.dot(h.astype(jnp.bfloat16), w2_ref[...],
                preferred_element_type=jnp.float32)
    h = _leaky_relu(h + b2_ref[...])

    # Layer 3: (bm, 512) @ (512, 256)
    h = jnp.dot(h.astype(jnp.bfloat16), w3_ref[...],
                preferred_element_type=jnp.float32)
    h = _leaky_relu(h + b3_ref[...])

    # Layer 4: out_features == 1 -> VPU multiply + lane (XLU) reduction instead
    # of a single-column MXU matmul.
    out = jnp.sum(h * w4_ref[...], axis=-1, keepdims=True) + b4_ref[...]
    o_ref[...] = out.astype(o_ref.dtype)


def prepare_params(params):
    """One-time weight prep (do this once per parameter update, NOT per call):
    bf16 casts of the matmul weights, f32 row-vector biases, f32 w4 row."""
    (w1, b1), (w2, b2), (w3, b3), (w4, b4) = params
    return (
        w1.astype(jnp.bfloat16), b1.reshape(1, -1).astype(jnp.float32),
        w2.astype(jnp.bfloat16), b2.reshape(1, -1).astype(jnp.float32),
        w3.astype(jnp.bfloat16), b3.reshape(1, -1).astype(jnp.float32),
        w4.reshape(1, -1).astype(jnp.float32),   # (1, 256), used on the VPU
        b4.reshape(1, 1).astype(jnp.float32),
    )


def deeper_discriminator(x, prepped_params, *, block_m=1024):
    """x: (B, in_dim) float32 -> (B,) float32.  Matches DeeperDiscriminator.forward.

    `prepped_params` comes from prepare_params().
    """
    w1, b1, w2, b2, w3, b3, w4, b4 = prepped_params
    B, in_dim = x.shape
    h1, h2, h3 = w1.shape[1], w2.shape[1], w3.shape[1]

    # ---- batch tiling -------------------------------------------------------
    # Big tiles amortize the ~0.35 us/step pipeline overhead.  Keep >= 2 grid
    # steps whenever B is non-trivial so v7x's 2 TensorCores (which split the
    # "parallel" axis) both get work, and size bm from the step count so batch
    # padding stays < 16 rows per step instead of up to block_m-1 rows.
    n_steps = max(pl.cdiv(B, block_m), 2 if B >= 32 else 1)
    bm = _round_up(pl.cdiv(B, n_steps), 16)   # multiple of 16: bf16 sublane packing
    b_pad = n_steps * bm

    # Only pad the batch dim, only when needed, and only by < bm rows.
    if b_pad != B:
        x = jnp.pad(x, ((0, b_pad - B), (0, 0)))

    def rep(shape):
        # Weights / biases: whole array, same block every grid step
        # (stays VMEM-resident across the batch loop; bf16 halves the footprint).
        return pl.BlockSpec(shape, lambda i: (0, 0))

    flops = 2 * b_pad * (in_dim * h1 + h1 * h2 + h2 * h3 + h3 * 1)
    bytes_accessed = (b_pad * in_dim * 4                       # x (f32)
                      + (in_dim * h1 + h1 * h2 + h2 * h3) * 2  # bf16 weights
                      + (h1 + h2 + h3) * 4 + h3 * 4 + 4        # biases + w4 row
                      + b_pad * 4)                             # output
    cost = pl.CostEstimate(flops=int(flops), transcendentals=0,
                           bytes_accessed=int(bytes_accessed))

    out = pl.pallas_call(
        mlp_kernel,
        out_shape=jax.ShapeDtypeStruct((b_pad, 1), jnp.float32),
        grid_spec=pltpu.PrefetchScalarGridSpec(
            num_scalar_prefetch=0,
            grid=(n_steps,),
            in_specs=[
                pl.BlockSpec((bm, in_dim), lambda i: (i, 0)),  # full-K tile, no 128 pad
                rep((in_dim, h1)), rep((1, h1)),
                rep((h1, h2)), rep((1, h2)),
                rep((h2, h3)), rep((1, h3)),
                rep((1, h3)), rep((1, 1)),
            ],
            out_specs=pl.BlockSpec((bm, 1), lambda i: (i, 0)),
        ),
        compiler_params=pltpu.CompilerParams(
            dimension_semantics=("parallel",),
            # Headroom above v5e's 16 MiB scoped-VMEM default for large bm;
            # well under physical VMEM on v5e/v6e (128 MiB) and v7x (64 MiB).
            vmem_limit_bytes=48 * 1024 * 1024),
        cost_estimate=cost,
    )(x, w1, b1, w2, b2, w3, b3, w4, b4)

    # nn.Sequential(...)(x).view(-1), dropping any zero-padded rows.
    return out[:B, 0]


def init_params(key, in_dim):
    """Same layer shapes as DeeperDiscriminator; weights (in,out), biases (1,out)."""
    dims = [(in_dim, 512), (512, 512), (512, 256), (256, 1)]
    params = []
    for (din, dout) in dims:
        key, kw, kb = jax.random.split(key, 3)
        bound = 1.0 / jnp.sqrt(din)   # same scale family as torch default init
        w = jax.random.uniform(kw, (din, dout), jnp.float32, -bound, bound)
        b = jax.random.uniform(kb, (1, dout), jnp.float32, -bound, bound)
        params.append((w, b))
    return params


def reference(x, params, *, bf16_matmul=True):
    """Pure-JAX reference.  With bf16_matmul=True it mirrors the kernel's
    numerics (bf16 matmul inputs, f32 accumulation / elementwise math)."""
    def dot(a, w):
        if bf16_matmul:
            a = a.astype(jnp.bfloat16).astype(jnp.float32)
            w = w.astype(jnp.bfloat16).astype(jnp.float32)
        return a @ w

    (w1, b1), (w2, b2), (w3, b3), (w4, b4) = params
    h = _leaky_relu(dot(x, w1) + b1)
    h = _leaky_relu(dot(h, w2) + b2)
    h = _leaky_relu(dot(h, w3) + b3)
    out = h @ w4 + b4                 # final layer is pure f32 in the kernel too
    return out.reshape(-1)


if __name__ == "__main__":
    key = jax.random.PRNGKey(0)
    kx, kp = jax.random.split(key)

    # Small shapes: in_dim not a multiple of 128 (exercises the full-K block),
    # batch not a multiple of the tile (exercises batch padding + 2-step grid).
    batch, in_dim = 70, 48
    x = jax.random.normal(kx, (batch, in_dim), jnp.float32)
    params = init_params(kp, in_dim)

    prepped = prepare_params(params)          # hoisted: once per param update
    fwd = jax.jit(deeper_discriminator)       # keep wrapper (pad etc.) in one jit

    y = jax.block_until_ready(fwd(x, prepped))
    assert y.shape == (batch,)

    # Tight check against a reference that uses the same bf16-in / f32-acc math.
    y_ref = reference(x, params, bf16_matmul=True)
    assert jnp.allclose(y, y_ref, atol=5e-3, rtol=5e-3), \
        float(jnp.max(jnp.abs(y - y_ref)))

    # Loose sanity check against pure-f32 math (bf16 MXU inputs cost ~1e-3 rel).
    y_f32 = reference(x, params, bf16_matmul=False)
    assert jnp.allclose(y, y_f32, atol=5e-2, rtol=5e-2)

    print("KERNEL_OK")
</pallas_src>

<mosaic_0001>
module attributes {stable_mosaic.version = 11 : i64} {
  func.func @mlp_kernel(%arg0: i32, %arg1: memref<48x48xf32, #tpu.memory_space<vmem>>, %arg2: memref<48x512xbf16, #tpu.memory_space<vmem>>, %arg3: memref<1x512xf32, #tpu.memory_space<vmem>>, %arg4: memref<512x512xbf16, #tpu.memory_space<vmem>>, %arg5: memref<1x512xf32, #tpu.memory_space<vmem>>, %arg6: memref<512x256xbf16, #tpu.memory_space<vmem>>, %arg7: memref<1x256xf32, #tpu.memory_space<vmem>>, %arg8: memref<1x256xf32, #tpu.memory_space<vmem>>, %arg9: memref<1x1xf32, #tpu.memory_space<vmem>>, %arg10: memref<48x1xf32, #tpu.memory_space<vmem>>) attributes {dimension_semantics = [#tpu.dimension_semantics<parallel>], iteration_bounds = array<i64: 2>, scalar_prefetch = 0 : i64, scratch_operands = 0 : i64, tpu.core_type = #tpu.core_type<tc>, window_params = [{transform_indices = @transform_0, window_bounds = array<i64: 48, 48>}, {pipeline_mode = #tpu.pipeline_mode<synchronous>, transform_indices = @transform_1, window_bounds = array<i64: 48, 512>}, {pipeline_mode = #tpu.pipeline_mode<synchronous>, transform_indices = @transform_2, window_bounds = array<i64: 1, 512>}, {pipeline_mode = #tpu.pipeline_mode<synchronous>, transform_indices = @transform_3, window_bounds = array<i64: 512, 512>}, {pipeline_mode = #tpu.pipeline_mode<synchronous>, transform_indices = @transform_4, window_bounds = array<i64: 1, 512>}, {pipeline_mode = #tpu.pipeline_mode<synchronous>, transform_indices = @transform_5, window_bounds = array<i64: 512, 256>}, {pipeline_mode = #tpu.pipeline_mode<synchronous>, transform_indices = @transform_6, window_bounds = array<i64: 1, 256>}, {pipeline_mode = #tpu.pipeline_mode<synchronous>, transform_indices = @transform_7, window_bounds = array<i64: 1, 256>}, {pipeline_mode = #tpu.pipeline_mode<synchronous>, transform_indices = @transform_8, window_bounds = array<i64: 1, 1>}, {transform_indices = @transform_9, window_bounds = array<i64: 48, 1>}]} {
    %c0 = arith.constant 0 : index
    %c0_0 = arith.constant 0 : index
    %0 = vector.load %arg1[%c0, %c0_0] : memref<48x48xf32, #tpu.memory_space<vmem>>, vector<48x48xf32>
    %1 = arith.truncf %0 : vector<48x48xf32> to vector<48x48xbf16>
    %c0_1 = arith.constant 0 : index
    %c0_2 = arith.constant 0 : index
    %2 = vector.load %arg2[%c0_1, %c0_2] : memref<48x512xbf16, #tpu.memory_space<vmem>>, vector<48x512xbf16>
    %cst = arith.constant dense<0.000000e+00> : vector<48x512xf32>
    %3 = tpu.matmul %1, %2, %cst {dimension_numbers = #tpu.dot_dimension_numbers<[1], [0], [0], [1], [0, 0, 1, 1], [], []>} : vector<48x48xbf16>, vector<48x512xbf16>, vector<48x512xf32> -> vector<48x512xf32>
    %c0_3 = arith.constant 0 : index
    %c0_4 = arith.constant 0 : index
    %4 = vector.load %arg3[%c0_3, %c0_4] : memref<1x512xf32, #tpu.memory_space<vmem>>, vector<1x512xf32>
    %5 = vector.broadcast %4 : vector<1x512xf32> to vector<48x512xf32>
    %6 = arith.addf %3, %5 : vector<48x512xf32>
    %cst_5 = arith.constant 0.000000e+00 : f32
    %7 = vector.broadcast %cst_5 : f32 to vector<48x512xf32>
    %8 = arith.cmpf ogt, %6, %7 : vector<48x512xf32>
    %cst_6 = arith.constant 2.000000e-01 : f32
    %9 = vector.broadcast %cst_6 : f32 to vector<48x512xf32>
    %10 = arith.mulf %9, %6 : vector<48x512xf32>
    %11 = arith.select %8, %6, %10 : vector<48x512xi1>, vector<48x512xf32>
    %12 = arith.truncf %11 : vector<48x512xf32> to vector<48x512xbf16>
    %c0_7 = arith.constant 0 : index
    %c0_8 = arith.constant 0 : index
    %13 = vector.load %arg4[%c0_7, %c0_8] : memref<512x512xbf16, #tpu.memory_space<vmem>>, vector<512x512xbf16>
    %cst_9 = arith.constant dense<0.000000e+00> : vector<48x512xf32>
    %14 = tpu.matmul %12, %13, %cst_9 {dimension_numbers = #tpu.dot_dimension_numbers<[1], [0], [0], [1], [0, 0, 1, 1], [], []>} : vector<48x512xbf16>, vector<512x512xbf16>, vector<48x512xf32> -> vector<48x512xf32>
    %c0_10 = arith.constant 0 : index
    %c0_11 = arith.constant 0 : index
    %15 = vector.load %arg5[%c0_10, %c0_11] : memref<1x512xf32, #tpu.memory_space<vmem>>, vector<1x512xf32>
    %16 = vector.broadcast %15 : vector<1x512xf32> to vector<48x512xf32>
    %17 = arith.addf %14, %16 : vector<48x512xf32>
    %cst_12 = arith.constant 0.000000e+00 : f32
    %18 = vector.broadcast %cst_12 : f32 to vector<48x512xf32>
    %19 = arith.cmpf ogt, %17, %18 : vector<48x512xf32>
    %cst_13 = arith.constant 2.000000e-01 : f32
    %20 = vector.broadcast %cst_13 : f32 to vector<48x512xf32>
    %21 = arith.mulf %20, %17 : vector<48x512xf32>
    %22 = arith.select %19, %17, %21 : vector<48x512xi1>, vector<48x512xf32>
    %23 = arith.truncf %22 : vector<48x512xf32> to vector<48x512xbf16>
    %c0_14 = arith.constant 0 : index
    %c0_15 = arith.constant 0 : index
    %24 = vector.load %arg6[%c0_14, %c0_15] : memref<512x256xbf16, #tpu.memory_space<vmem>>, vector<512x256xbf16>
    %cst_16 = arith.constant dense<0.000000e+00> : vector<48x256xf32>
    %25 = tpu.matmul %23, %24, %cst_16 {dimension_numbers = #tpu.dot_dimension_numbers<[1], [0], [0], [1], [0, 0, 1, 1], [], []>} : vector<48x512xbf16>, vector<512x256xbf16>, vector<48x256xf32> -> vector<48x256xf32>
    %c0_17 = arith.constant 0 : index
    %c0_18 = arith.constant 0 : index
    %26 = vector.load %arg7[%c0_17, %c0_18] : memref<1x256xf32, #tpu.memory_space<vmem>>, vector<1x256xf32>
    %27 = vector.broadcast %26 : vector<1x256xf32> to vector<48x256xf32>
    %28 = arith.addf %25, %27 : vector<48x256xf32>
    %cst_19 = arith.constant 0.000000e+00 : f32
    %29 = vector.broadcast %cst_19 : f32 to vector<48x256xf32>
    %30 = arith.cmpf ogt, %28, %29 : vector<48x256xf32>
    %cst_20 = arith.constant 2.000000e-01 : f32
    %31 = vector.broadcast %cst_20 : f32 to vector<48x256xf32>
    %32 = arith.mulf %31, %28 : vector<48x256xf32>
    %33 = arith.select %30, %28, %32 : vector<48x256xi1>, vector<48x256xf32>
    %c0_21 = arith.constant 0 : index
    %c0_22 = arith.constant 0 : index
    %34 = vector.load %arg8[%c0_21, %c0_22] : memref<1x256xf32, #tpu.memory_space<vmem>>, vector<1x256xf32>
    %35 = vector.broadcast %34 : vector<1x256xf32> to vector<48x256xf32>
    %36 = arith.mulf %33, %35 : vector<48x256xf32>
    %cst_23 = arith.constant dense<0.000000e+00> : vector<48xf32>
    %37 = vector.multi_reduction <add>, %36, %cst_23 [1] : vector<48x256xf32> to vector<48xf32>
    %38 = vector.shape_cast %37 : vector<48xf32> to vector<48x1xf32>
    %c0_24 = arith.constant 0 : index
    %c0_25 = arith.constant 0 : index
    %39 = vector.load %arg9[%c0_24, %c0_25] : memref<1x1xf32, #tpu.memory_space<vmem>>, vector<1x1xf32>
    %40 = vector.broadcast %39 : vector<1x1xf32> to vector<48x1xf32>
    %41 = arith.addf %38, %40 : vector<48x1xf32>
    %c0_26 = arith.constant 0 : index
    %c0_27 = arith.constant 0 : index
    %42 = vector.load %arg10[%c0_26, %c0_27] : memref<48x1xf32, #tpu.memory_space<vmem>>, vector<48x1xf32>
    tpu.vector_store %arg10[%c0_26, %c0_27], %41 {strides = array<i32>} : memref<48x1xf32, #tpu.memory_space<vmem>>, vector<48x1xf32>,
    return
  }
  func.func @transform_0(%arg0: i32) -> (i32, i32) {
    %c0_i32 = arith.constant 0 : i32
    %c0_i32_0 = arith.constant 0 : i32
    return %arg0, %c0_i32 : i32, i32
  }
  func.func @transform_1(%arg0: i32) -> (i32, i32) {
    %c0_i32 = arith.constant 0 : i32
    %c0_i32_0 = arith.constant 0 : i32
    %c0_i32_1 = arith.constant 0 : i32
    return %c0_i32, %c0_i32_0 : i32, i32
  }
  func.func @transform_2(%arg0: i32) -> (i32, i32) {
    %c0_i32 = arith.constant 0 : i32
    %c0_i32_0 = arith.constant 0 : i32
    %c0_i32_1 = arith.constant 0 : i32
    return %c0_i32, %c0_i32_0 : i32, i32
  }
  func.func @transform_3(%arg0: i32) -> (i32, i32) {
    %c0_i32 = arith.constant 0 : i32
    %c0_i32_0 = arith.constant 0 : i32
    %c0_i32_1 = arith.constant 0 : i32
    return %c0_i32, %c0_i32_0 : i32, i32
  }
  func.func @transform_4(%arg0: i32) -> (i32, i32) {
    %c0_i32 = arith.constant 0 : i32
    %c0_i32_0 = arith.constant 0 : i32
    %c0_i32_1 = arith.constant 0 : i32
    return %c0_i32, %c0_i32_0 : i32, i32
  }
  func.func @transform_5(%arg0: i32) -> (i32, i32) {
    %c0_i32 = arith.constant 0 : i32
    %c0_i32_0 = arith.constant 0 : i32
    %c0_i32_1 = arith.constant 0 : i32
    return %c0_i32, %c0_i32_0 : i32, i32
  }
  func.func @transform_6(%arg0: i32) -> (i32, i32) {
    %c0_i32 = arith.constant 0 : i32
    %c0_i32_0 = arith.constant 0 : i32
    %c0_i32_1 = arith.constant 0 : i32
    return %c0_i32, %c0_i32_0 : i32, i32
  }
  func.func @transform_7(%arg0: i32) -> (i32, i32) {
    %c0_i32 = arith.constant 0 : i32
    %c0_i32_0 = arith.constant 0 : i32
    %c0_i32_1 = arith.constant 0 : i32
    return %c0_i32, %c0_i32_0 : i32, i32
  }
  func.func @transform_8(%arg0: i32) -> (i32, i32) {
    %c0_i32 = arith.constant 0 : i32
    %c0_i32_0 = arith.constant 0 : i32
    %c0_i32_1 = arith.constant 0 : i32
    return %c0_i32, %c0_i32_0 : i32, i32
  }
  func.func @transform_9(%arg0: i32) -> (i32, i32) {
    %c0_i32 = arith.constant 0 : i32
    %c0_i32_0 = arith.constant 0 : i32
    return %arg0, %c0_i32 : i32, i32
  }
}

</mosaic_0001>

<llo_original>
// kernel: deeper_discriminator.1
$region0: #{deeper_discriminator.1}
  #allocation0 [shape = 'u32[]', space=smem, size = 0x4, offset = 0x4, fixed_abs, tag = 'smem constant byte address 0x4 - core index']
  #allocation1 [shape = 'u32[72,128]{1,0:T(1,128)}', space=vmem, size = 0x9000, scoped, tag = 'internal scratch']
  #allocation2 [shape = 'f32[1,1]{1,0:T(1,128)S(1)}', space=vmem, size = 0x200, scoped, tag = 'scoped memory for deeper_discriminator.1']
  %s0 = inlined_call_operand.vmem [shape: f32[96,48], index: 0, kind: input, shape index: {}]
  %s1 = inlined_call_operand.vmem [shape: bf16[48,512], index: 1, kind: input, shape index: {}]
  %s2 = inlined_call_operand.vmem [shape: f32[1,512], index: 2, kind: input, shape index: {}]
  %s3 = inlined_call_operand.hbm [shape: bf16[512,512], index: 3, kind: input, shape index: {}]
  %s4 = inlined_call_operand.vmem [shape: f32[1,512], index: 4, kind: input, shape index: {}]
  %s5 = inlined_call_operand.hbm [shape: bf16[512,256], index: 5, kind: input, shape index: {}]
  %s6 = inlined_call_operand.vmem [shape: f32[1,256], index: 6, kind: input, shape index: {}]
  %s7 = inlined_call_operand.vmem [shape: f32[1,256], index: 7, kind: input, shape index: {}]
  %s8 = inlined_call_operand.<no memory space> [shape: f32[1,1], index: 8, kind: input, shape index: {}]
  %s9 = inlined_call_operand.vmem [shape: f32[96,1], index: 9, kind: output, shape index: {}]
  %s10 = sld [smem:[#allocation0]]
  $region77: #{deeper_discriminator.1} parent=0
    _
  %s12 = ssub.s32 1, %s10
  %s13 = scalar_select 0, %s12, %s10
  %v14 = vstv %s8
  %15 = vst [vmem:[#allocation2] sm:$0x1] %v14
  $region1: #{deeper_discriminator.1} parent=0
    #allocation3 [shape = 'u8[524288]{0}', space=vmem, size = 0x80000, scoped, tag = 'input window, operand 3, single buffered']
    #allocation4 [shape = 's32[2]{0}', space=sflag, size = 0x8, scoped, tag = 'scoped memory for deeper_discriminator.1']
    #allocation5 [shape = 'u8[262144]{0}', space=vmem, size = 0x40000, scoped, tag = 'input window, operand 5, single buffered']
    #allocation6 [shape = 's32[1]{0}', space=sflag, size = 0x4, scoped, tag = 'scoped memory for deeper_discriminator.1']
    %16 = vsyncpa [#allocation4], 0
    %17 = vsyncpa [#allocation6], 0
    loop: start=0, step=1, limit=4
    $region2: #{deeper_discriminator.1} parent=1 // loop_pre_header
      _
    $region3: #{deeper_discriminator.1} parent=1 // loop_header
      %s19 = sphi 0, %s23
      %p20 = scmp.ge.s32.totalorder %s19, 4
      %s29 = sphi 0, %s31
      %s32 = sphi 0, %s29
      %s33 = sphi 0, %s32
      %s49 = sphi 0, %s33
      %s53 = sphi 0, %s53
      %s55 = sphi 0, %s53
      %s56 = sphi 0, %s55
      %s70 = sphi 0, %s56
      %s74 = sphi 0, %s74
      %s76 = sphi 0, %s74
      %s77 = sphi 0, %s76
      %s91 = sphi 0, %s77
      %s95 = sphi 0, %s95
      %s97 = sphi 0, %s95
      %s98 = sphi 0, %s97
      %s112 = sphi 0, %s98
      %s116 = sphi 0, %s116
      %s118 = sphi 0, %s116
      %s119 = sphi 0, %s118
      %s133 = sphi 0, %s119
      %s137 = sphi 0, %s137
      %s139 = sphi 0, %s137
      %s140 = sphi 0, %s139
      %s154 = sphi 0, %s140
      %s158 = sphi 0, %s158
      %s160 = sphi 0, %s158
      %s161 = sphi 0, %s160
      %s175 = sphi 0, %s161
      %s179 = sphi 0, %s179
      %s181 = sphi 0, %s179
      %s182 = sphi 0, %s181
      %s196 = sphi 0, %s182
      %s200 = sphi 0, %s200
      %s202 = sphi 0, %s200
      %s203 = sphi 0, %s202
      %s217 = sphi 0, %s203
      %s223 = sphi 0, %s225
      %s226 = sphi 0, %s223
      %s227 = sphi 0, %s226
      %s243 = sphi 0, %s227
    $region4: #{deeper_discriminator.1} parent=1 // loop_header_branch
      %22 = sbr.rel (%p20) target = $region8
    $region5: #{deeper_discriminator.1} parent=1 // loop_body
      %s24 = ssub.s32 %s19, 1
      %s25 = ssub.s32 %s19, 2
      %s26 = sadd.s32 %s19, 1
      %s27 = ssub.s32 %s19, %s26
      %p28 = scmp.eq.s32.totalorder %s27, 0
      %s30 = sadd.s32 %s29, 1
      %s31 = scalar_select %p28, %s29, %s30
      %p34 = pneg %p28
      %p35 = scmp.eq.s32.totalorder %s19, 1
      %p36 = por %p34, %p35
      %p37 = scmp.ne.s32.totalorder %s29, %s32
      %p38 = scmp.eq.s32.totalorder %s19, 0
      %p39 = por %p37, %p38
      %p40 = scmp.ne.s32.totalorder %s29, %s32
      %p41 = scmp.eq.s32.totalorder %s24, 1
      %p42 = por %p40, %p41
      %p43 = scmp.ne.s32.totalorder %s32, %s33
      %p44 = scmp.eq.s32.totalorder %s24, 0
      %p45 = por %p43, %p44
      %p46 = scmp.ne.s32.totalorder %s32, %s33
      %p47 = scmp.eq.s32.totalorder %s25, 1
      %p48 = por %p46, %p47
      %p50 = scmp.ne.s32.totalorder %s33, %s49
      %p51 = scmp.eq.s32.totalorder %s25, 0
      %p52 = por %p50, %p51
      %s54 = sadd.s32 %s53, 1
      %p57 = scmp.eq.s32.totalorder %s19, 1
      %p58 = scmp.ne.s32.totalorder %s53, %s55
      %p59 = scmp.eq.s32.totalorder %s19, 0
      %p60 = por %p58, %p59
      %p61 = scmp.ne.s32.totalorder %s53, %s55
      %p62 = scmp.eq.s32.totalorder %s24, 1
      %p63 = por %p61, %p62
      %p64 = scmp.ne.s32.totalorder %s55, %s56
      %p65 = scmp.eq.s32.totalorder %s24, 0
      %p66 = por %p64, %p65
      %p67 = scmp.ne.s32.totalorder %s55, %s56
      %p68 = scmp.eq.s32.totalorder %s25, 1
      %p69 = por %p67, %p68
      %p71 = scmp.ne.s32.totalorder %s56, %s70
      %p72 = scmp.eq.s32.totalorder %s25, 0
      %p73 = por %p71, %p72
      %s75 = sadd.s32 %s74, 1
      %p78 = scmp.eq.s32.totalorder %s19, 1
      %p79 = scmp.ne.s32.totalorder %s74, %s76
      %p80 = scmp.eq.s32.totalorder %s19, 0
      %p81 = por %p79, %p80
      %p82 = scmp.ne.s32.totalorder %s74, %s76
      %p83 = scmp.eq.s32.totalorder %s24, 1
      %p84 = por %p82, %p83
      %p85 = scmp.ne.s32.totalorder %s76, %s77
      %p86 = scmp.eq.s32.totalorder %s24, 0
      %p87 = por %p85, %p86
      %p88 = scmp.ne.s32.totalorder %s76, %s77
      %p89 = scmp.eq.s32.totalorder %s25, 1
      %p90 = por %p88, %p89
      %p92 = scmp.ne.s32.totalorder %s77, %s91
      %p93 = scmp.eq.s32.totalorder %s25, 0
      %p94 = por %p92, %p93
      %s96 = sadd.s32 %s95, 1
      %p99 = scmp.eq.s32.totalorder %s19, 1
      %p100 = scmp.ne.s32.totalorder %s95, %s97
      %p101 = scmp.eq.s32.totalorder %s19, 0
      %p102 = por %p100, %p101
      %p103 = scmp.ne.s32.totalorder %s95, %s97
      %p104 = scmp.eq.s32.totalorder %s24, 1
      %p105 = por %p103, %p104
      %p106 = scmp.ne.s32.totalorder %s97, %s98
      %p107 = scmp.eq.s32.totalorder %s24, 0
      %p108 = por %p106, %p107
      %p109 = scmp.ne.s32.totalorder %s97, %s98
      %p110 = scmp.eq.s32.totalorder %s25, 1
      %p111 = por %p109, %p110
      %p113 = scmp.ne.s32.totalorder %s98, %s112
      %p114 = scmp.eq.s32.totalorder %s25, 0
      %p115 = por %p113, %p114
      %s117 = sadd.s32 %s116, 1
      %p120 = scmp.eq.s32.totalorder %s19, 1
      %p121 = scmp.ne.s32.totalorder %s116, %s118
      %p122 = scmp.eq.s32.totalorder %s19, 0
      %p123 = por %p121, %p122
      %p124 = scmp.ne.s32.totalorder %s116, %s118
      %p125 = scmp.eq.s32.totalorder %s24, 1
      %p126 = por %p124, %p125
      %p127 = scmp.ne.s32.totalorder %s118, %s119
      %p128 = scmp.eq.s32.totalorder %s24, 0
      %p129 = por %p127, %p128
      %p130 = scmp.ne.s32.totalorder %s118, %s119
      %p131 = scmp.eq.s32.totalorder %s25, 1
      %p132 = por %p130, %p131
      %p134 = scmp.ne.s32.totalorder %s119, %s133
      %p135 = scmp.eq.s32.totalorder %s25, 0
      %p136 = por %p134, %p135
      %s138 = sadd.s32 %s137, 1
      %p141 = scmp.eq.s32.totalorder %s19, 1
      %p142 = scmp.ne.s32.totalorder %s137, %s139
      %p143 = scmp.eq.s32.totalorder %s19, 0
      %p144 = por %p142, %p143
      %p145 = scmp.ne.s32.totalorder %s137, %s139
      %p146 = scmp.eq.s32.totalorder %s24, 1
      %p147 = por %p145, %p146
      %p148 = scmp.ne.s32.totalorder %s139, %s140
      %p149 = scmp.eq.s32.totalorder %s24, 0
      %p150 = por %p148, %p149
      %p151 = scmp.ne.s32.totalorder %s139, %s140
      %p152 = scmp.eq.s32.totalorder %s25, 1
      %p153 = por %p151, %p152
      %p155 = scmp.ne.s32.totalorder %s140, %s154
      %p156 = scmp.eq.s32.totalorder %s25, 0
      %p157 = por %p155, %p156
      %s159 = sadd.s32 %s158, 1
      %p162 = scmp.eq.s32.totalorder %s19, 1
      %p163 = scmp.ne.s32.totalorder %s158, %s160
      %p164 = scmp.eq.s32.totalorder %s19, 0
      %p165 = por %p163, %p164
      %p166 = scmp.ne.s32.totalorder %s158, %s160
      %p167 = scmp.eq.s32.totalorder %s24, 1
      %p168 = por %p166, %p167
      %p169 = scmp.ne.s32.totalorder %s160, %s161
      %p170 = scmp.eq.s32.totalorder %s24, 0
      %p171 = por %p169, %p170
      %p172 = scmp.ne.s32.totalorder %s160, %s161
      %p173 = scmp.eq.s32.totalorder %s25, 1
      %p174 = por %p172, %p173
      %p176 = scmp.ne.s32.totalorder %s161, %s175
      %p177 = scmp.eq.s32.totalorder %s25, 0
      %p178 = por %p176, %p177
      %s180 = sadd.s32 %s179, 1
      %p183 = scmp.eq.s32.totalorder %s19, 1
      %p184 = scmp.ne.s32.totalorder %s179, %s181
      %p185 = scmp.eq.s32.totalorder %s19, 0
      %p186 = por %p184, %p185
      %p187 = scmp.ne.s32.totalorder %s179, %s181
      %p188 = scmp.eq.s32.totalorder %s24, 1
      %p189 = por %p187, %p188
      %p190 = scmp.ne.s32.totalorder %s181, %s182
      %p191 = scmp.eq.s32.totalorder %s24, 0
      %p192 = por %p190, %p191
      %p193 = scmp.ne.s32.totalorder %s181, %s182
      %p194 = scmp.eq.s32.totalorder %s25, 1
      %p195 = por %p193, %p194
      %p197 = scmp.ne.s32.totalorder %s182, %s196
      %p198 = scmp.eq.s32.totalorder %s25, 0
      %p199 = por %p197, %p198
      %s201 = sadd.s32 %s200, 1
      %p204 = scmp.eq.s32.totalorder %s19, 1
      %p205 = scmp.ne.s32.totalorder %s200, %s202
      %p206 = scmp.eq.s32.totalorder %s19, 0
      %p207 = por %p205, %p206
      %p208 = scmp.ne.s32.totalorder %s200, %s202
      %p209 = scmp.eq.s32.totalorder %s24, 1
      %p210 = por %p208, %p209
      %p211 = scmp.ne.s32.totalorder %s202, %s203
      %p212 = scmp.eq.s32.totalorder %s24, 0
      %p213 = por %p211, %p212
      %p214 = scmp.ne.s32.totalorder %s202, %s203
      %p215 = scmp.eq.s32.totalorder %s25, 1
      %p216 = por %p214, %p215
      %p218 = scmp.ne.s32.totalorder %s203, %s217
      %p219 = scmp.eq.s32.totalorder %s25, 0
      %p220 = por %p218, %p219
      %s221 = ssub.s32 %s19, %s26
      %p222 = scmp.eq.s32.totalorder %s221, 0
      %s224 = sadd.s32 %s223, 1
      %s225 = scalar_select %p222, %s223, %s224
      %p228 = pneg %p222
      %p229 = scmp.eq.s32.totalorder %s19, 1
      %p230 = por %p228, %p229
      %p231 = scmp.ne.s32.totalorder %s223, %s226
      %p232 = scmp.eq.s32.totalorder %s19, 0
      %p233 = por %p231, %p232
      %p234 = scmp.ne.s32.totalorder %s223, %s226
      %p235 = scmp.eq.s32.totalorder %s24, 1
      %p236 = por %p234, %p235
      %p237 = scmp.ne.s32.totalorder %s226, %s227
      %p238 = scmp.eq.s32.totalorder %s24, 0
      %p239 = por %p237, %p238
      %p240 = scmp.ne.s32.totalorder %s226, %s227
      %p241 = scmp.eq.s32.totalorder %s25, 1
      %p242 = por %p240, %p241
      %p244 = scmp.ne.s32.totalorder %s227, %s243
      %p245 = scmp.eq.s32.totalorder %s25, 0
      %p246 = por %p244, %p245
      %p247 = scmp.le.s32.totalorder 1, %s19
      %p248 = scmp.lt.s32.totalorder %s19, 3
      %p249 = pnand %p247, %p248
      %p250 = pneg %p249
      // Predicated region
      $region9: #{deeper_discriminator.1} parent=5 // pred_check
        _
      $region10: #{deeper_discriminator.1} parent=5 // pred_check_branch
        %252 = sbr.rel (%p249) target = $region12
      $region11: #{deeper_discriminator.1} parent=5 // pred_region
        %s253 = ssub.s32 %s19, 1
        // Predicated region
        $region13: #{deeper_discriminator.1} parent=11 // pred_check
          %p254 = pneg %p66
        $region14: #{deeper_discriminator.1} parent=11 // pred_check_branch
          %256 = sbr.rel (%p254) target = $region16
        $region15: #{deeper_discriminator.1} parent=11 // pred_region
          _
        $region16: #{deeper_discriminator.1} parent=11 // pred_fallthru
          _
        // Predicated region
        $region17: #{deeper_discriminator.1} parent=11 // pred_check
          %p257 = pneg %p87
        $region18: #{deeper_discriminator.1} parent=11 // pred_check_branch
          %259 = sbr.rel (%p257) target = $region20
        $region19: #{deeper_discriminator.1} parent=11 // pred_region
          _
        $region20: #{deeper_discriminator.1} parent=11 // pred_fallthru
          _
        // Predicated region
        $region21: #{deeper_discriminator.1} parent=11 // pred_check
          %p260 = pneg %p108
        $region22: #{deeper_discriminator.1} parent=11 // pred_check_branch
          %262 = sbr.rel (%p260) target = $region24
        $region23: #{deeper_discriminator.1} parent=11 // pred_region
          %264 = vsyncadd [#allocation4], 0
          %s265 = sshll.u32 %s3, 4
          %s266 = int_to_ptr.hbm [resolvable:$true] %s265
          %s267 = sshll.u32 [#allocation3], 4
          %s268 = int_to_ptr.vmem [resolvable:$true] %s267
          %273 = dma.hbm_to_vmem [thread:$0]  %s266, 16384, %s268, [#allocation4], 256, 256, 16
        $region24: #{deeper_discriminator.1} parent=11 // pred_fallthru
          _
        // Predicated region
        $region25: #{deeper_discriminator.1} parent=11 // pred_check
          %p274 = pneg %p129
        $region26: #{deeper_discriminator.1} parent=11 // pred_check_branch
          %276 = sbr.rel (%p274) target = $region28
        $region27: #{deeper_discriminator.1} parent=11 // pred_region
          _
        $region28: #{deeper_discriminator.1} parent=11 // pred_fallthru
          _
        // Predicated region
        $region29: #{deeper_discriminator.1} parent=11 // pred_check
          %p277 = pneg %p150
        $region30: #{deeper_discriminator.1} parent=11 // pred_check_branch
          %279 = sbr.rel (%p277) target = $region32
        $region31: #{deeper_discriminator.1} parent=11 // pred_region
          %281 = vsyncadd [#allocation6], 0
          %s282 = sshll.u32 %s5, 4
          %s283 = int_to_ptr.hbm [resolvable:$true] %s282
          %s284 = sshll.u32 [#allocation5], 4
          %s285 = int_to_ptr.vmem [resolvable:$true] %s284
          %290 = dma.hbm_to_vmem [thread:$0]  %s283, 8192, %s285, [#allocation6], 128, 128, 8
        $region32: #{deeper_discriminator.1} parent=11 // pred_fallthru
          _
        // Predicated region
        $region33: #{deeper_discriminator.1} parent=11 // pred_check
          %p291 = pneg %p171
        $region34: #{deeper_discriminator.1} parent=11 // pred_check_branch
          %293 = sbr.rel (%p291) target = $region36
        $region35: #{deeper_discriminator.1} parent=11 // pred_region
          _
        $region36: #{deeper_discriminator.1} parent=11 // pred_fallthru
          _
        // Predicated region
        $region37: #{deeper_discriminator.1} parent=11 // pred_check
          %p294 = pneg %p192
        $region38: #{deeper_discriminator.1} parent=11 // pred_check_branch
          %296 = sbr.rel (%p294) target = $region40
        $region39: #{deeper_discriminator.1} parent=11 // pred_region
          _
        $region40: #{deeper_discriminator.1} parent=11 // pred_fallthru
          _
        // Predicated region
        $region41: #{deeper_discriminator.1} parent=11 // pred_check
          %p297 = pneg %p213
        $region42: #{deeper_discriminator.1} parent=11 // pred_check_branch
          %299 = sbr.rel (%p297) target = $region44
        $region43: #{deeper_discriminator.1} parent=11 // pred_region
          _
        $region44: #{deeper_discriminator.1} parent=11 // pred_fallthru
          _
      $region12: #{deeper_discriminator.1} parent=5 // pred_fallthru
        _
      %p300 = scmp.lt.s32.totalorder %s19, 2
      // Predicated region
      $region45: #{deeper_discriminator.1} parent=5 // pred_check
        %p301 = pneg %p300
      $region46: #{deeper_discriminator.1} parent=5 // pred_check_branch
        %303 = sbr.rel (%p301) target = $region48
      $region47: #{deeper_discriminator.1} parent=5 // pred_region
        // Predicated region
        $region49: #{deeper_discriminator.1} parent=47 // pred_check
          %p304 = pneg %p39
        $region50: #{deeper_discriminator.1} parent=47 // pred_check_branch
          %306 = sbr.rel (%p304) target = $region52
        $region51: #{deeper_discriminator.1} parent=47 // pred_region
          %s307 = smul.u32 6, %s19
          %p308 = scmp.lt.s32.totalorder %s307, 11
          %s309 = scalar_select %p308, %s307, 11
          %s310 = smul.addr %s309, 8
          %s311 = scalar_lea.vmem %s0, %s310
          %s312 = smul.u32 6, %s19
        $region52: #{deeper_discriminator.1} parent=47 // pred_fallthru
          _
      $region48: #{deeper_discriminator.1} parent=5 // pred_fallthru
        _
      %p313 = scmp.le.s32.totalorder 1, %s19
      %p314 = scmp.lt.s32.totalorder %s19, 3
      %p315 = pnand %p313, %p314
      %p316 = pneg %p315
      // Predicated region
      $region53: #{deeper_discriminator.1} parent=5 // pred_check
        _
      $region54: #{deeper_discriminator.1} parent=5 // pred_check_branch
        %318 = sbr.rel (%p315) target = $region56
      $region55: #{deeper_discriminator.1} parent=5 // pred_region
        %s319 = ssub.s32 %s19, 1
        // Predicated region
        $region57: #{deeper_discriminator.1} parent=55 // pred_check
          %p320 = pneg %p108
        $region58: #{deeper_discriminator.1} parent=55 // pred_check_branch
          %322 = sbr.rel (%p320) target = $region60
        $region59: #{deeper_discriminator.1} parent=55 // pred_region
          %324 = dma.done [#allocation4], 16384
        $region60: #{deeper_discriminator.1} parent=55 // pred_fallthru
          _
        // Predicated region
        $region61: #{deeper_discriminator.1} parent=55 // pred_check
          %p325 = pneg %p150
        $region62: #{deeper_discriminator.1} parent=55 // pred_check_branch
          %327 = sbr.rel (%p325) target = $region64
        $region63: #{deeper_discriminator.1} parent=55 // pred_region
          %329 = dma.done [#allocation6], 8192
        $region64: #{deeper_discriminator.1} parent=55 // pred_fallthru
          _
        %s330 = smul.u32 6, %s24
        %p331 = scmp.lt.s32.totalorder %s330, 11
        %s332 = scalar_select %p331, %s330, 11
        %s333 = smul.addr %s332, 8
        %s334 = scalar_lea.vmem %s0, %s333
        %p335 = pneg %p45
        %p336 = pneg %p42
        %p337 = pneg %p66
        %p338 = pneg %p63
        %p339 = pneg %p87
        %p340 = pneg %p84
        %p341 = pneg %p108
        %p342 = pneg %p105
        %p343 = pneg %p129
        %p344 = pneg %p126
        %p345 = pneg %p150
        %p346 = pneg %p147
        %p347 = pneg %p171
        %p348 = pneg %p168
        %p349 = pneg %p192
        %p350 = pneg %p189
        %p351 = pneg %p213
        %p352 = pneg %p210
        %p353 = pneg %p239
        %p354 = pneg %p236
        %s355 = smul.u32 6, %s24
        %p356 = scmp.lt.s32.totalorder %s355, 11
        %s357 = scalar_select %p356, %s355, 11
        %s358 = smul.addr %s357, 8
        %s359 = scalar_lea.vmem %s9, %s358
        %s360 = smul.u32 6, %s24
        %p361 = scmp.lt.s32.totalorder %s360, 11
        %s362 = scalar_select %p361, %s360, 11
        %s363 = smul.addr %s362, 8
        %s364 = scalar_lea.vmem %s0, %s363
        %s365 = smul.u32 6, %s24
        %s366 = smul.u32 6, %s24
        %p367 = scmp.lt.s32.totalorder %s366, 11
        %s368 = scalar_select %p367, %s366, 11
        %s369 = smul.addr %s368, 8
        %s370 = scalar_lea.vmem %s9, %s369
        %s371 = smul.u32 6, %s24
        %v373 = vld [vmem:[%s364] sm:$0xff]
        %v374 = vld [vmem:[%s364 + $0x8] sm:$0xff]
        %v375 = vld [vmem:[%s364 + $0x10] sm:$0xff]
        %v376 = vld [vmem:[%s364 + $0x18] sm:$0xff]
        %v377 = vld [vmem:[%s364 + $0x20] sm:$0xff]
        %v378 = vld [vmem:[%s364 + $0x28] sm:$0xff]
        %v379 = vpack.c.bf16 %v374, %v373
        %v380 = vpack.c.bf16 %v376, %v375
        %v381 = vpack.c.bf16 %v378, %v377
        %v382 = vld [vmem:[%s1] sm:$0xff]
        %v383 = vld [vmem:[%s1 + $0x8] sm:$0xff]
        %v384 = vld [vmem:[%s1 + $0x10] sm:$0xff]
        %v385 = vld [vmem:[%s1 + $0x18] sm:$0xff]
        %v386 = vld [vmem:[%s1 + $0x20] sm:$0xff]
        %v387 = vld [vmem:[%s1 + $0x28] sm:$0xff]
        %v388 = vld [vmem:[%s1 + $0x30] sm:$0xff]
        %v389 = vld [vmem:[%s1 + $0x38] sm:$0xff]
        %v390 = vld [vmem:[%s1 + $0x40] sm:$0xff]
        %v391 = vld [vmem:[%s1 + $0x48] sm:$0xff]
        %v392 = vld [vmem:[%s1 + $0x50] sm:$0xff]
        %v393 = vld [vmem:[%s1 + $0x58] sm:$0xff]
        %v394 = vld [vmem:[%s2] sm:$0xf]
        %v396 = vperm.slane %v394, 0
        %v397 = vperm.slane %v394, 1
        %v398 = vperm.slane %v394, 2
        %v399 = vperm.slane %v394, 3
        %v416 = vunpack.c.l.b16 %v382
        %v417 = vunpack.c.h.b16 %v382
        %v418 = vunpack.c.l.b16 %v383
        %v419 = vunpack.c.h.b16 %v383
        %v420 = vunpack.c.l.b16 %v384
        %v421 = vunpack.c.h.b16 %v384
        %v422 = vunpack.c.l.b16 %v385
        %v423 = vunpack.c.h.b16 %v385
        %v424 = vunpack.c.l.b16 %v386
        %v425 = vunpack.c.h.b16 %v386
        %v426 = vunpack.c.l.b16 %v387
        %v427 = vunpack.c.h.b16 %v387
        %v428 = vunpack.c.l.b16 %v388
        %v429 = vunpack.c.h.b16 %v388
        %v430 = vunpack.c.l.b16 %v389
        %v431 = vunpack.c.h.b16 %v389
        %v432 = vunpack.c.l.b16 %v390
        %v433 = vunpack.c.h.b16 %v390
        %v434 = vunpack.c.l.b16 %v391
        %v435 = vunpack.c.h.b16 %v391
        %v436 = vunpack.c.l.b16 %v392
        %v437 = vunpack.c.h.b16 %v392
        %v438 = vunpack.c.l.b16 %v393
        %v439 = vunpack.c.h.b16 %v393
        %v440 = vpack.c.b16 %v420, %v416
        %v441 = vpack.c.b16 %v421, %v417
        %v442 = vpack.c.b16 %v422, %v418
        %v443 = vpack.c.b16 %v423, %v419
        %v444 = vpack.c.b16 %v428, %v424
        %v445 = vpack.c.b16 %v429, %v425
        %v446 = vpack.c.b16 %v430, %v426
        %v447 = vpack.c.b16 %v431, %v427
        %v448 = vpack.c.b16 %v436, %v432
        %v449 = vpack.c.b16 %v437, %v433
        %v450 = vpack.c.b16 %v438, %v434
        %v451 = vpack.c.b16 %v439, %v435
        %vm464 = vcmask 392192
        %v466 = vsel %vm464, %v379, 0
        %v469 = vsel %vm464, %v380, 0
        %v472 = vsel %vm464, %v381, 0
        %474 = vmatpush.bf16.msra.mxu0 0
        %475 = vmatpush.bf16.msra.mxu0 0
        %476 = vmatpush.bf16.msra.mxu0 0
        %477 = vmatpush.bf16.msra.mxu0 0
        %478 = vmatpush.bf16.msra.mxu0 0
        %479 = vmatpush.bf16.msra.mxu0 %v448
        %480 = vmatpush.bf16.msra.mxu0 %v444
        %481 = vmatpush.bf16.msra.mxu0 %v440
        %482 = vmatmul.bf16.gmra.mxu0 %v466
        %v483 = vpop.f32.mrf.mxu0
        %v484 = vadd.f32 %v396, %v483
        %v485 = vpop.f32.mrf.mxu0
        %v486 = vadd.f32 %v396, %v485
        %487 = vmatmul.bf16.gmra.mxu0 %v469
        %v488 = vpop.f32.mrf.mxu0
        %v489 = vadd.f32 %v396, %v488
        %v490 = vpop.f32.mrf.mxu0
        %v491 = vadd.f32 %v396, %v490
        %492 = vmatmul.bf16.gmra.mxu0 %v472
        %v493 = vpop.f32.mrf.mxu0
        %v494 = vadd.f32 %v396, %v493
        %v495 = vpop.f32.mrf.mxu0
        %v496 = vadd.f32 %v396, %v495
        %497 = vdwg.mxu0
        %498 = vmatpush.bf16.msra.mxu0 0
        %499 = vmatpush.bf16.msra.mxu0 0
        %500 = vmatpush.bf16.msra.mxu0 0
        %501 = vmatpush.bf16.msra.mxu0 0
        %502 = vmatpush.bf16.msra.mxu0 0
        %503 = vmatpush.bf16.msra.mxu0 %v449
        %504 = vmatpush.bf16.msra.mxu0 %v445
        %505 = vmatpush.bf16.msra.mxu0 %v441
        %506 = vmatmul.bf16.gmra.mxu0 %v466
        %v507 = vpop.f32.mrf.mxu0
        %v508 = vadd.f32 %v397, %v507
        %v509 = vpop.f32.mrf.mxu0
        %v510 = vadd.f32 %v397, %v509
        %511 = vmatmul.bf16.gmra.mxu0 %v469
        %v512 = vpop.f32.mrf.mxu0
        %v513 = vadd.f32 %v397, %v512
        %v514 = vpop.f32.mrf.mxu0
        %v515 = vadd.f32 %v397, %v514
        %516 = vmatmul.bf16.gmra.mxu0 %v472
        %v517 = vpop.f32.mrf.mxu0
        %v518 = vadd.f32 %v397, %v517
        %v519 = vpop.f32.mrf.mxu0
        %v520 = vadd.f32 %v397, %v519
        %521 = vdwg.mxu0
        %522 = vmatpush.bf16.msra.mxu0 0
        %523 = vmatpush.bf16.msra.mxu0 0
        %524 = vmatpush.bf16.msra.mxu0 0
        %525 = vmatpush.bf16.msra.mxu0 0
        %526 = vmatpush.bf16.msra.mxu0 0
        %527 = vmatpush.bf16.msra.mxu0 %v450
        %528 = vmatpush.bf16.msra.mxu0 %v446
        %529 = vmatpush.bf16.msra.mxu0 %v442
        %530 = vmatmul.bf16.gmra.mxu0 %v466
        %v531 = vpop.f32.mrf.mxu0
        %v532 = vadd.f32 %v398, %v531
        %v533 = vpop.f32.mrf.mxu0
        %v534 = vadd.f32 %v398, %v533
        %535 = vmatmul.bf16.gmra.mxu0 %v469
        %v536 = vpop.f32.mrf.mxu0
        %v537 = vadd.f32 %v398, %v536
        %v538 = vpop.f32.mrf.mxu0
        %v539 = vadd.f32 %v398, %v538
        %540 = vmatmul.bf16.gmra.mxu0 %v472
        %v541 = vpop.f32.mrf.mxu0
        %v542 = vadd.f32 %v398, %v541
        %v543 = vpop.f32.mrf.mxu0
        %v544 = vadd.f32 %v398, %v543
        %545 = vdwg.mxu0
        %546 = vmatpush.bf16.msra.mxu0 0
        %547 = vmatpush.bf16.msra.mxu0 0
        %548 = vmatpush.bf16.msra.mxu0 0
        %549 = vmatpush.bf16.msra.mxu0 0
        %550 = vmatpush.bf16.msra.mxu0 0
        %551 = vmatpush.bf16.msra.mxu0 %v451
        %552 = vmatpush.bf16.msra.mxu0 %v447
        %553 = vmatpush.bf16.msra.mxu0 %v443
        %554 = vmatmul.bf16.gmra.mxu0 %v466
        %v555 = vpop.f32.mrf.mxu0
        %v556 = vadd.f32 %v399, %v555
        %v557 = vpop.f32.mrf.mxu0
        %v558 = vadd.f32 %v399, %v557
        %559 = vmatmul.bf16.gmra.mxu0 %v469
        %v560 = vpop.f32.mrf.mxu0
        %v561 = vadd.f32 %v399, %v560
        %v562 = vpop.f32.mrf.mxu0
        %v563 = vadd.f32 %v399, %v562
        %564 = vmatmul.bf16.gmra.mxu0 %v472
        %v565 = vpop.f32.mrf.mxu0
        %v566 = vadd.f32 %v399, %v565
        %v567 = vpop.f32.mrf.mxu0
        %v568 = vadd.f32 %v399, %v567
        %569 = vdwg.mxu0
        %vm570 = vcmp.gt.f32.partialorder %v484, 0.0
        %vm571 = vcmp.gt.f32.partialorder %v508, 0.0
        %vm572 = vcmp.gt.f32.partialorder %v532, 0.0
        %vm573 = vcmp.gt.f32.partialorder %v556, 0.0
        %vm574 = vcmp.gt.f32.partialorder %v486, 0.0
        %vm575 = vcmp.gt.f32.partialorder %v510, 0.0
        %vm576 = vcmp.gt.f32.partialorder %v534, 0.0
        %vm577 = vcmp.gt.f32.partialorder %v558, 0.0
        %vm578 = vcmp.gt.f32.partialorder %v489, 0.0
        %vm579 = vcmp.gt.f32.partialorder %v513, 0.0
        %vm580 = vcmp.gt.f32.partialorder %v537, 0.0
        %vm581 = vcmp.gt.f32.partialorder %v561, 0.0
        %vm582 = vcmp.gt.f32.partialorder %v491, 0.0
        %vm583 = vcmp.gt.f32.partialorder %v515, 0.0
        %vm584 = vcmp.gt.f32.partialorder %v539, 0.0
        %vm585 = vcmp.gt.f32.partialorder %v563, 0.0
        %vm586 = vcmp.gt.f32.partialorder %v494, 0.0
        %vm587 = vcmp.gt.f32.partialorder %v518, 0.0
        %vm588 = vcmp.gt.f32.partialorder %v542, 0.0
        %vm589 = vcmp.gt.f32.partialorder %v566, 0.0
        %vm590 = vcmp.gt.f32.partialorder %v496, 0.0
        %vm591 = vcmp.gt.f32.partialorder %v520, 0.0
        %vm592 = vcmp.gt.f32.partialorder %v544, 0.0
        %vm593 = vcmp.gt.f32.partialorder %v568, 0.0
        %v594 = vmul.f32 %v484, 0.2
        %v595 = vmul.f32 %v508, 0.2
        %v596 = vmul.f32 %v532, 0.2
        %v597 = vmul.f32 %v556, 0.2
        %v598 = vmul.f32 %v486, 0.2
        %v599 = vmul.f32 %v510, 0.2
        %v600 = vmul.f32 %v534, 0.2
        %v601 = vmul.f32 %v558, 0.2
        %v602 = vmul.f32 %v489, 0.2
        %v603 = vmul.f32 %v513, 0.2
        %v604 = vmul.f32 %v537, 0.2
        %v605 = vmul.f32 %v561, 0.2
        %v606 = vmul.f32 %v491, 0.2
        %v607 = vmul.f32 %v515, 0.2
        %v608 = vmul.f32 %v539, 0.2
        %v609 = vmul.f32 %v563, 0.2
        %v610 = vmul.f32 %v494, 0.2
        %v611 = vmul.f32 %v518, 0.2
        %v612 = vmul.f32 %v542, 0.2
        %v613 = vmul.f32 %v566, 0.2
        %v614 = vmul.f32 %v496, 0.2
        %v615 = vmul.f32 %v520, 0.2
        %v616 = vmul.f32 %v544, 0.2
        %v617 = vmul.f32 %v568, 0.2
        %v618 = vsel %vm570, %v484, %v594
        %v619 = vsel %vm571, %v508, %v595
        %v620 = vsel %vm572, %v532, %v596
        %v621 = vsel %vm573, %v556, %v597
        %v622 = vsel %vm574, %v486, %v598
        %v623 = vsel %vm575, %v510, %v599
        %v624 = vsel %vm576, %v534, %v600
        %v625 = vsel %vm577, %v558, %v601
        %v626 = vsel %vm578, %v489, %v602
        %v627 = vsel %vm579, %v513, %v603
        %v628 = vsel %vm580, %v537, %v604
        %v629 = vsel %vm581, %v561, %v605
        %v630 = vsel %vm582, %v491, %v606
        %v631 = vsel %vm583, %v515, %v607
        %v632 = vsel %vm584, %v539, %v608
        %v633 = vsel %vm585, %v563, %v609
        %v634 = vsel %vm586, %v494, %v610
        %v635 = vsel %vm587, %v518, %v611
        %v636 = vsel %vm588, %v542, %v612
        %v637 = vsel %vm589, %v566, %v613
        %v638 = vsel %vm590, %v496, %v614
        %v639 = vsel %vm591, %v520, %v615
        %v640 = vsel %vm592, %v544, %v616
        %v641 = vsel %vm593, %v568, %v617
        %v642 = vpack.c.bf16 %v622, %v618
        %v643 = vpack.c.bf16 %v623, %v619
        %v644 = vpack.c.bf16 %v624, %v620
        %v645 = vpack.c.bf16 %v625, %v621
        %v646 = vpack.c.bf16 %v630, %v626
        %v647 = vpack.c.bf16 %v631, %v627
        %v648 = vpack.c.bf16 %v632, %v628
        %v649 = vpack.c.bf16 %v633, %v629
        %v650 = vpack.c.bf16 %v638, %v634
        %v651 = vpack.c.bf16 %v639, %v635
        %v652 = vpack.c.bf16 %v640, %v636
        %v653 = vpack.c.bf16 %v641, %v637
        %v654 = vld [vmem:[#allocation3] sm:$0xff]
        %v655 = vld [vmem:[#allocation3 + $0x8] sm:$0xff]
        %v656 = vld [vmem:[#allocation3 + $0x10] sm:$0xff]
        %v657 = vld [vmem:[#allocation3 + $0x18] sm:$0xff]
        %v658 = vld [vmem:[#allocation3 + $0x20] sm:$0xff]
        %v659 = vld [vmem:[#allocation3 + $0x28] sm:$0xff]
        %v660 = vld [vmem:[#allocation3 + $0x30] sm:$0xff]
        %v661 = vld [vmem:[#allocation3 + $0x38] sm:$0xff]
        %v662 = vld [vmem:[#allocation3 + $0x40] sm:$0xff]
        %v663 = vld [vmem:[#allocation3 + $0x48] sm:$0xff]
        %v664 = vld [vmem:[#allocation3 + $0x50] sm:$0xff]
        %v665 = vld [vmem:[#allocation3 + $0x58] sm:$0xff]
        %v666 = vld [vmem:[#allocation3 + $0x60] sm:$0xff]
        %v667 = vld [vmem:[#allocation3 + $0x68] sm:$0xff]
        %v668 = vld [vmem:[#allocation3 + $0x70] sm:$0xff]
        %v669 = vld [vmem:[#allocation3 + $0x78] sm:$0xff]
        %v670 = vld [vmem:[#allocation3 + $0x80] sm:$0xff]
        %v671 = vld [vmem:[#allocation3 + $0x88] sm:$0xff]
        %v672 = vld [vmem:[#allocation3 + $0x90] sm:$0xff]
        %v673 = vld [vmem:[#allocation3 + $0x98] sm:$0xff]
        %v674 = vld [vmem:[#allocation3 + $0xa0] sm:$0xff]
        %v675 = vld [vmem:[#allocation3 + $0xa8] sm:$0xff]
        %v676 = vld [vmem:[#allocation3 + $0xb0] sm:$0xff]
        %v677 = vld [vmem:[#allocation3 + $0xb8] sm:$0xff]
        %v678 = vld [vmem:[#allocation3 + $0xc0] sm:$0xff]
        %v679 = vld [vmem:[#allocation3 + $0xc8] sm:$0xff]
        %v680 = vld [vmem:[#allocation3 + $0xd0] sm:$0xff]
        %v681 = vld [vmem:[#allocation3 + $0xd8] sm:$0xff]
        %v682 = vld [vmem:[#allocation3 + $0xe0] sm:$0xff]
        %v683 = vld [vmem:[#allocation3 + $0xe8] sm:$0xff]
        %v684 = vld [vmem:[#allocation3 + $0xf0] sm:$0xff]
        %v685 = vld [vmem:[#allocation3 + $0xf8] sm:$0xff]
        %v686 = vld [vmem:[#allocation3 + $0x100] sm:$0xff]
        %v687 = vld [vmem:[#allocation3 + $0x108] sm:$0xff]
        %v688 = vld [vmem:[#allocation3 + $0x110] sm:$0xff]
        %v689 = vld [vmem:[#allocation3 + $0x118] sm:$0xff]
        %v690 = vld [vmem:[#allocation3 + $0x120] sm:$0xff]
        %v691 = vld [vmem:[#allocation3 + $0x128] sm:$0xff]
        %v692 = vld [vmem:[#allocation3 + $0x130] sm:$0xff]
        %v693 = vld [vmem:[#allocation3 + $0x138] sm:$0xff]
        %v694 = vld [vmem:[#allocation3 + $0x140] sm:$0xff]
        %v695 = vld [vmem:[#allocation3 + $0x148] sm:$0xff]
        %v696 = vld [vmem:[#allocation3 + $0x150] sm:$0xff]
        %v697 = vld [vmem:[#allocation3 + $0x158] sm:$0xff]
        %v698 = vld [vmem:[#allocation3 + $0x160] sm:$0xff]
        %v699 = vld [vmem:[#allocation3 + $0x168] sm:$0xff]
        %v700 = vld [vmem:[#allocation3 + $0x170] sm:$0xff]
        %v701 = vld [vmem:[#allocation3 + $0x178] sm:$0xff]
        %v702 = vld [vmem:[#allocation3 + $0x180] sm:$0xff]
        %v703 = vld [vmem:[#allocation3 + $0x188] sm:$0xff]
        %v704 = vld [vmem:[#allocation3 + $0x190] sm:$0xff]
        %v705 = vld [vmem:[#allocation3 + $0x198] sm:$0xff]
        %v706 = vld [vmem:[#allocation3 + $0x1a0] sm:$0xff]
        %v707 = vld [vmem:[#allocation3 + $0x1a8] sm:$0xff]
        %v708 = vld [vmem:[#allocation3 + $0x1b0] sm:$0xff]
        %v709 = vld [vmem:[#allocation3 + $0x1b8] sm:$0xff]
        %v710 = vld [vmem:[#allocation3 + $0x1c0] sm:$0xff]
        %v711 = vld [vmem:[#allocation3 + $0x1c8] sm:$0xff]
        %v712 = vld [vmem:[#allocation3 + $0x1d0] sm:$0xff]
        %v713 = vld [vmem:[#allocation3 + $0x1d8] sm:$0xff]
        %v714 = vld [vmem:[#allocation3 + $0x1e0] sm:$0xff]
        %v715 = vld [vmem:[#allocation3 + $0x1e8] sm:$0xff]
        %v716 = vld [vmem:[#allocation3 + $0x1f0] sm:$0xff]
        %v717 = vld [vmem:[#allocation3 + $0x1f8] sm:$0xff]
        %v718 = vld [vmem:[#allocation3 + $0x200] sm:$0xff]
        %v719 = vld [vmem:[#allocation3 + $0x208] sm:$0xff]
        %v720 = vld [vmem:[#allocation3 + $0x210] sm:$0xff]
        %v721 = vld [vmem:[#allocation3 + $0x218] sm:$0xff]
        %v722 = vld [vmem:[#allocation3 + $0x220] sm:$0xff]
        %v723 = vld [vmem:[#allocation3 + $0x228] sm:$0xff]
        %v724 = vld [vmem:[#allocation3 + $0x230] sm:$0xff]
        %v725 = vld [vmem:[#allocation3 + $0x238] sm:$0xff]
        %v726 = vld [vmem:[#allocation3 + $0x240] sm:$0xff]
        %v727 = vld [vmem:[#allocation3 + $0x248] sm:$0xff]
        %v728 = vld [vmem:[#allocation3 + $0x250] sm:$0xff]
        %v729 = vld [vmem:[#allocation3 + $0x258] sm:$0xff]
        %v730 = vld [vmem:[#allocation3 + $0x260] sm:$0xff]
        %v731 = vld [vmem:[#allocation3 + $0x268] sm:$0xff]
        %v732 = vld [vmem:[#allocation3 + $0x270] sm:$0xff]
        %v733 = vld [vmem:[#allocation3 + $0x278] sm:$0xff]
        %v734 = vld [vmem:[#allocation3 + $0x280] sm:$0xff]
        %v735 = vld [vmem:[#allocation3 + $0x288] sm:$0xff]
        %v736 = vld [vmem:[#allocation3 + $0x290] sm:$0xff]
        %v737 = vld [vmem:[#allocation3 + $0x298] sm:$0xff]
        %v738 = vld [vmem:[#allocation3 + $0x2a0] sm:$0xff]
        %v739 = vld [vmem:[#allocation3 + $0x2a8] sm:$0xff]
        %v740 = vld [vmem:[#allocation3 + $0x2b0] sm:$0xff]
        %v741 = vld [vmem:[#allocation3 + $0x2b8] sm:$0xff]
        %v742 = vld [vmem:[#allocation3 + $0x2c0] sm:$0xff]
        %v743 = vld [vmem:[#allocation3 + $0x2c8] sm:$0xff]
        %v744 = vld [vmem:[#allocation3 + $0x2d0] sm:$0xff]
        %v745 = vld [vmem:[#allocation3 + $0x2d8] sm:$0xff]
        %v746 = vld [vmem:[#allocation3 + $0x2e0] sm:$0xff]
        %v747 = vld [vmem:[#allocation3 + $0x2e8] sm:$0xff]
        %v748 = vld [vmem:[#allocation3 + $0x2f0] sm:$0xff]
        %v749 = vld [vmem:[#allocation3 + $0x2f8] sm:$0xff]
        %v750 = vld [vmem:[#allocation3 + $0x300] sm:$0xff]
        %v751 = vld [vmem:[#allocation3 + $0x308] sm:$0xff]
        %v752 = vld [vmem:[#allocation3 + $0x310] sm:$0xff]
        %v753 = vld [vmem:[#allocation3 + $0x318] sm:$0xff]
        %v754 = vld [vmem:[#allocation3 + $0x320] sm:$0xff]
        %v755 = vld [vmem:[#allocation3 + $0x328] sm:$0xff]
        %v756 = vld [vmem:[#allocation3 + $0x330] sm:$0xff]
        %v757 = vld [vmem:[#allocation3 + $0x338] sm:$0xff]
        %v758 = vld [vmem:[#allocation3 + $0x340] sm:$0xff]
        %v759 = vld [vmem:[#allocation3 + $0x348] sm:$0xff]
        %v760 = vld [vmem:[#allocation3 + $0x350] sm:$0xff]
        %v761 = vld [vmem:[#allocation3 + $0x358] sm:$0xff]
        %v762 = vld [vmem:[#allocation3 + $0x360] sm:$0xff]
        %v763 = vld [vmem:[#allocation3 + $0x368] sm:$0xff]
        %v764 = vld [vmem:[#allocation3 + $0x370] sm:$0xff]
        %v765 = vld [vmem:[#allocation3 + $0x378] sm:$0xff]
        %v766 = vld [vmem:[#allocation3 + $0x380] sm:$0xff]
        %v767 = vld [vmem:[#allocation3 + $0x388] sm:$0xff]
        %v768 = vld [vmem:[#allocation3 + $0x390] sm:$0xff]
        %v769 = vld [vmem:[#allocation3 + $0x398] sm:$0xff]
        %v770 = vld [vmem:[#allocation3 + $0x3a0] sm:$0xff]
        %v771 = vld [vmem:[#allocation3 + $0x3a8] sm:$0xff]
        %v772 = vld [vmem:[#allocation3 + $0x3b0] sm:$0xff]
        %v773 = vld [vmem:[#allocation3 + $0x3b8] sm:$0xff]
        %v774 = vld [vmem:[#allocation3 + $0x3c0] sm:$0xff]
        %v775 = vld [vmem:[#allocation3 + $0x3c8] sm:$0xff]
        %v776 = vld [vmem:[#allocation3 + $0x3d0] sm:$0xff]
        %v777 = vld [vmem:[#allocation3 + $0x3d8] sm:$0xff]
        %v778 = vld [vmem:[#allocation3 + $0x3e0] sm:$0xff]
        %v779 = vld [vmem:[#allocation3 + $0x3e8] sm:$0xff]
        %v780 = vld [vmem:[#allocation3 + $0x3f0] sm:$0xff]
        %v781 = vld [vmem:[#allocation3 + $0x3f8] sm:$0xff]
        %v782 = vld [vmem:[%s4] sm:$0xf]
        %v784 = vperm.slane %v782, 0
        %v785 = vperm.slane %v782, 1
        %v786 = vperm.slane %v782, 2
        %v787 = vperm.slane %v782, 3
        %v920 = vunpack.c.l.b16 %v654
        %v921 = vunpack.c.h.b16 %v654
        %v922 = vunpack.c.l.b16 %v655
        %v923 = vunpack.c.h.b16 %v655
        %v924 = vunpack.c.l.b16 %v656
        %v925 = vunpack.c.h.b16 %v656
        %v926 = vunpack.c.l.b16 %v657
        %v927 = vunpack.c.h.b16 %v657
        %v928 = vunpack.c.l.b16 %v658
        %v929 = vunpack.c.h.b16 %v658
        %v930 = vunpack.c.l.b16 %v659
        %v931 = vunpack.c.h.b16 %v659
        %v932 = vunpack.c.l.b16 %v660
        %v933 = vunpack.c.h.b16 %v660
        %v934 = vunpack.c.l.b16 %v661
        %v935 = vunpack.c.h.b16 %v661
        %v936 = vunpack.c.l.b16 %v662
        %v937 = vunpack.c.h.b16 %v662
        %v938 = vunpack.c.l.b16 %v663
        %v939 = vunpack.c.h.b16 %v663
        %v940 = vunpack.c.l.b16 %v664
        %v941 = vunpack.c.h.b16 %v664
        %v942 = vunpack.c.l.b16 %v665
        %v943 = vunpack.c.h.b16 %v665
        %v944 = vunpack.c.l.b16 %v666
        %v945 = vunpack.c.h.b16 %v666
        %v946 = vunpack.c.l.b16 %v667
        %v947 = vunpack.c.h.b16 %v667
        %v948 = vunpack.c.l.b16 %v668
        %v949 = vunpack.c.h.b16 %v668
        %v950 = vunpack.c.l.b16 %v669
        %v951 = vunpack.c.h.b16 %v669
        %v952 = vunpack.c.l.b16 %v670
        %v953 = vunpack.c.h.b16 %v670
        %v954 = vunpack.c.l.b16 %v671
        %v955 = vunpack.c.h.b16 %v671
        %v956 = vunpack.c.l.b16 %v672
        %v957 = vunpack.c.h.b16 %v672
        %v958 = vunpack.c.l.b16 %v673
        %v959 = vunpack.c.h.b16 %v673
        %v960 = vunpack.c.l.b16 %v674
        %v961 = vunpack.c.h.b16 %v674
        %v962 = vunpack.c.l.b16 %v675
        %v963 = vunpack.c.h.b16 %v675
        %v964 = vunpack.c.l.b16 %v676
        %v965 = vunpack.c.h.b16 %v676
        %v966 = vunpack.c.l.b16 %v677
        %v967 = vunpack.c.h.b16 %v677
        %v968 = vunpack.c.l.b16 %v678
        %v969 = vunpack.c.h.b16 %v678
        %v970 = vunpack.c.l.b16 %v679
        %v971 = vunpack.c.h.b16 %v679
        %v972 = vunpack.c.l.b16 %v680
        %v973 = vunpack.c.h.b16 %v680
        %v974 = vunpack.c.l.b16 %v681
        %v975 = vunpack.c.h.b16 %v681
        %v976 = vunpack.c.l.b16 %v682
        %v977 = vunpack.c.h.b16 %v682
        %v978 = vunpack.c.l.b16 %v683
        %v979 = vunpack.c.h.b16 %v683
        %v980 = vunpack.c.l.b16 %v684
        %v981 = vunpack.c.h.b16 %v684
        %v982 = vunpack.c.l.b16 %v685
        %v983 = vunpack.c.h.b16 %v685
        %v984 = vunpack.c.l.b16 %v686
        %v985 = vunpack.c.h.b16 %v686
        %v986 = vunpack.c.l.b16 %v687
        %v987 = vunpack.c.h.b16 %v687
        %v988 = vunpack.c.l.b16 %v688
        %v989 = vunpack.c.h.b16 %v688
        %v990 = vunpack.c.l.b16 %v689
        %v991 = vunpack.c.h.b16 %v689
        %v992 = vunpack.c.l.b16 %v690
        %v993 = vunpack.c.h.b16 %v690
        %v994 = vunpack.c.l.b16 %v691
        %v995 = vunpack.c.h.b16 %v691
        %v996 = vunpack.c.l.b16 %v692
        %v997 = vunpack.c.h.b16 %v692
        %v998 = vunpack.c.l.b16 %v693
        %v999 = vunpack.c.h.b16 %v693
        %v1000 = vunpack.c.l.b16 %v694
        %v1001 = vunpack.c.h.b16 %v694
        %v1002 = vunpack.c.l.b16 %v695
        %v1003 = vunpack.c.h.b16 %v695
        %v1004 = vunpack.c.l.b16 %v696
        %v1005 = vunpack.c.h.b16 %v696
        %v1006 = vunpack.c.l.b16 %v697
        %v1007 = vunpack.c.h.b16 %v697
        %v1008 = vunpack.c.l.b16 %v698
        %v1009 = vunpack.c.h.b16 %v698
        %v1010 = vunpack.c.l.b16 %v699
        %v1011 = vunpack.c.h.b16 %v699
        %v1012 = vunpack.c.l.b16 %v700
        %v1013 = vunpack.c.h.b16 %v700
        %v1014 = vunpack.c.l.b16 %v701
        %v1015 = vunpack.c.h.b16 %v701
        %v1016 = vunpack.c.l.b16 %v702
        %v1017 = vunpack.c.h.b16 %v702
        %v1018 = vunpack.c.l.b16 %v703
        %v1019 = vunpack.c.h.b16 %v703
        %v1020 = vunpack.c.l.b16 %v704
        %v1021 = vunpack.c.h.b16 %v704
        %v1022 = vunpack.c.l.b16 %v705
        %v1023 = vunpack.c.h.b16 %v705
        %v1024 = vunpack.c.l.b16 %v706
        %v1025 = vunpack.c.h.b16 %v706
        %v1026 = vunpack.c.l.b16 %v707
        %v1027 = vunpack.c.h.b16 %v707
        %v1028 = vunpack.c.l.b16 %v708
        %v1029 = vunpack.c.h.b16 %v708
        %v1030 = vunpack.c.l.b16 %v709
        %v1031 = vunpack.c.h.b16 %v709
        %v1032 = vunpack.c.l.b16 %v710
        %v1033 = vunpack.c.h.b16 %v710
        %v1034 = vunpack.c.l.b16 %v711
        %v1035 = vunpack.c.h.b16 %v711
        %v1036 = vunpack.c.l.b16 %v712
        %v1037 = vunpack.c.h.b16 %v712
        %v1038 = vunpack.c.l.b16 %v713
        %v1039 = vunpack.c.h.b16 %v713
        %v1040 = vunpack.c.l.b16 %v714
        %v1041 = vunpack.c.h.b16 %v714
        %v1042 = vunpack.c.l.b16 %v715
        %v1043 = vunpack.c.h.b16 %v715
        %v1044 = vunpack.c.l.b16 %v716
        %v1045 = vunpack.c.h.b16 %v716
        %v1046 = vunpack.c.l.b16 %v717
        %v1047 = vunpack.c.h.b16 %v717
        %v1048 = vunpack.c.l.b16 %v718
        %v1049 = vunpack.c.h.b16 %v718
        %v1050 = vunpack.c.l.b16 %v719
        %v1051 = vunpack.c.h.b16 %v719
        %v1052 = vunpack.c.l.b16 %v720
        %v1053 = vunpack.c.h.b16 %v720
        %v1054 = vunpack.c.l.b16 %v721
        %v1055 = vunpack.c.h.b16 %v721
        %v1056 = vunpack.c.l.b16 %v722
        %v1057 = vunpack.c.h.b16 %v722
        %v1058 = vunpack.c.l.b16 %v723
        %v1059 = vunpack.c.h.b16 %v723
        %v1060 = vunpack.c.l.b16 %v724
        %v1061 = vunpack.c.h.b16 %v724
        %v1062 = vunpack.c.l.b16 %v725
        %v1063 = vunpack.c.h.b16 %v725
        %v1064 = vunpack.c.l.b16 %v726
        %v1065 = vunpack.c.h.b16 %v726
        %v1066 = vunpack.c.l.b16 %v727
        %v1067 = vunpack.c.h.b16 %v727
        %v1068 = vunpack.c.l.b16 %v728
        %v1069 = vunpack.c.h.b16 %v728
        %v1070 = vunpack.c.l.b16 %v729
        %v1071 = vunpack.c.h.b16 %v729
        %v1072 = vunpack.c.l.b16 %v730
        %v1073 = vunpack.c.h.b16 %v730
        %v1074 = vunpack.c.l.b16 %v731
        %v1075 = vunpack.c.h.b16 %v731
        %v1076 = vunpack.c.l.b16 %v732
        %v1077 = vunpack.c.h.b16 %v732
        %v1078 = vunpack.c.l.b16 %v733
        %v1079 = vunpack.c.h.b16 %v733
        %v1080 = vunpack.c.l.b16 %v734
        %v1081 = vunpack.c.h.b16 %v734
        %v1082 = vunpack.c.l.b16 %v735
        %v1083 = vunpack.c.h.b16 %v735
        %v1084 = vunpack.c.l.b16 %v736
        %v1085 = vunpack.c.h.b16 %v736
        %v1086 = vunpack.c.l.b16 %v737
        %v1087 = vunpack.c.h.b16 %v737
        %v1088 = vunpack.c.l.b16 %v738
        %v1089 = vunpack.c.h.b16 %v738
        %v1090 = vunpack.c.l.b16 %v739
        %v1091 = vunpack.c.h.b16 %v739
        %v1092 = vunpack.c.l.b16 %v740
        %v1093 = vunpack.c.h.b16 %v740
        %v1094 = vunpack.c.l.b16 %v741
        %v1095 = vunpack.c.h.b16 %v741
        %v1096 = vunpack.c.l.b16 %v742
        %v1097 = vunpack.c.h.b16 %v742
        %v1098 = vunpack.c.l.b16 %v743
        %v1099 = vunpack.c.h.b16 %v743
        %v1100 = vunpack.c.l.b16 %v744
        %v1101 = vunpack.c.h.b16 %v744
        %v1102 = vunpack.c.l.b16 %v745
        %v1103 = vunpack.c.h.b16 %v745
        %v1104 = vunpack.c.l.b16 %v746
        %v1105 = vunpack.c.h.b16 %v746
        %v1106 = vunpack.c.l.b16 %v747
        %v1107 = vunpack.c.h.b16 %v747
        %v1108 = vunpack.c.l.b16 %v748
        %v1109 = vunpack.c.h.b16 %v748
        %v1110 = vunpack.c.l.b16 %v749
        %v1111 = vunpack.c.h.b16 %v749
        %v1112 = vunpack.c.l.b16 %v750
        %v1113 = vunpack.c.h.b16 %v750
        %v1114 = vunpack.c.l.b16 %v751
        %v1115 = vunpack.c.h.b16 %v751
        %v1116 = vunpack.c.l.b16 %v752
        %v1117 = vunpack.c.h.b16 %v752
        %v1118 = vunpack.c.l.b16 %v753
        %v1119 = vunpack.c.h.b16 %v753
        %v1120 = vunpack.c.l.b16 %v754
        %v1121 = vunpack.c.h.b16 %v754
        %v1122 = vunpack.c.l.b16 %v755
        %v1123 = vunpack.c.h.b16 %v755
        %v1124 = vunpack.c.l.b16 %v756
        %v1125 = vunpack.c.h.b16 %v756
        %v1126 = vunpack.c.l.b16 %v757
        %v1127 = vunpack.c.h.b16 %v757
        %v1128 = vunpack.c.l.b16 %v758
        %v1129 = vunpack.c.h.b16 %v758
        %v1130 = vunpack.c.l.b16 %v759
        %v1131 = vunpack.c.h.b16 %v759
        %v1132 = vunpack.c.l.b16 %v760
        %v1133 = vunpack.c.h.b16 %v760
        %v1134 = vunpack.c.l.b16 %v761
        %v1135 = vunpack.c.h.b16 %v761
        %v1136 = vunpack.c.l.b16 %v762
        %v1137 = vunpack.c.h.b16 %v762
        %v1138 = vunpack.c.l.b16 %v763
        %v1139 = vunpack.c.h.b16 %v763
        %v1140 = vunpack.c.l.b16 %v764
        %v1141 = vunpack.c.h.b16 %v764
        %v1142 = vunpack.c.l.b16 %v765
        %v1143 = vunpack.c.h.b16 %v765
        %v1144 = vunpack.c.l.b16 %v766
        %v1145 = vunpack.c.h.b16 %v766
        %v1146 = vunpack.c.l.b16 %v767
        %v1147 = vunpack.c.h.b16 %v767
        %v1148 = vunpack.c.l.b16 %v768
        %v1149 = vunpack.c.h.b16 %v768
        %v1150 = vunpack.c.l.b16 %v769
        %v1151 = vunpack.c.h.b16 %v769
        %v1152 = vunpack.c.l.b16 %v770
        %v1153 = vunpack.c.h.b16 %v770
        %v1154 = vunpack.c.l.b16 %v771
        %v1155 = vunpack.c.h.b16 %v771
        %v1156 = vunpack.c.l.b16 %v772
        %v1157 = vunpack.c.h.b16 %v772
        %v1158 = vunpack.c.l.b16 %v773
        %v1159 = vunpack.c.h.b16 %v773
        %v1160 = vunpack.c.l.b16 %v774
        %v1161 = vunpack.c.h.b16 %v774
        %v1162 = vunpack.c.l.b16 %v775
        %v1163 = vunpack.c.h.b16 %v775
        %v1164 = vunpack.c.l.b16 %v776
        %v1165 = vunpack.c.h.b16 %v776
        %v1166 = vunpack.c.l.b16 %v777
        %v1167 = vunpack.c.h.b16 %v777
        %v1168 = vunpack.c.l.b16 %v778
        %v1169 = vunpack.c.h.b16 %v778
        %v1170 = vunpack.c.l.b16 %v779
        %v1171 = vunpack.c.h.b16 %v779
        %v1172 = vunpack.c.l.b16 %v780
        %v1173 = vunpack.c.h.b16 %v780
        %v1174 = vunpack.c.l.b16 %v781
        %v1175 = vunpack.c.h.b16 %v781
        %v1176 = vpack.c.b16 %v924, %v920
        %v1177 = vpack.c.b16 %v925, %v921
        %v1178 = vpack.c.b16 %v926, %v922
        %v1179 = vpack.c.b16 %v927, %v923
        %v1180 = vpack.c.b16 %v932, %v928
        %v1181 = vpack.c.b16 %v933, %v929
        %v1182 = vpack.c.b16 %v934, %v930
        %v1183 = vpack.c.b16 %v935, %v931
        %v1184 = vpack.c.b16 %v940, %v936
        %v1185 = vpack.c.b16 %v941, %v937
        %v1186 = vpack.c.b16 %v942, %v938
        %v1187 = vpack.c.b16 %v943, %v939
        %v1188 = vpack.c.b16 %v948, %v944
        %v1189 = vpack.c.b16 %v949, %v945
        %v1190 = vpack.c.b16 %v950, %v946
        %v1191 = vpack.c.b16 %v951, %v947
        %v1192 = vpack.c.b16 %v956, %v952
        %v1193 = vpack.c.b16 %v957, %v953
        %v1194 = vpack.c.b16 %v958, %v954
        %v1195 = vpack.c.b16 %v959, %v955
        %v1196 = vpack.c.b16 %v964, %v960
        %v1197 = vpack.c.b16 %v965, %v961
        %v1198 = vpack.c.b16 %v966, %v962
        %v1199 = vpack.c.b16 %v967, %v963
        %v1200 = vpack.c.b16 %v972, %v968
        %v1201 = vpack.c.b16 %v973, %v969
        %v1202 = vpack.c.b16 %v974, %v970
        %v1203 = vpack.c.b16 %v975, %v971
        %v1204 = vpack.c.b16 %v980, %v976
        %v1205 = vpack.c.b16 %v981, %v977
        %v1206 = vpack.c.b16 %v982, %v978
        %v1207 = vpack.c.b16 %v983, %v979
        %v1208 = vpack.c.b16 %v988, %v984
        %v1209 = vpack.c.b16 %v989, %v985
        %v1210 = vpack.c.b16 %v990, %v986
        %v1211 = vpack.c.b16 %v991, %v987
        %v1212 = vpack.c.b16 %v996, %v992
        %v1213 = vpack.c.b16 %v997, %v993
        %v1214 = vpack.c.b16 %v998, %v994
        %v1215 = vpack.c.b16 %v999, %v995
        %v1216 = vpack.c.b16 %v1004, %v1000
        %v1217 = vpack.c.b16 %v1005, %v1001
        %v1218 = vpack.c.b16 %v1006, %v1002
        %v1219 = vpack.c.b16 %v1007, %v1003
        %v1220 = vpack.c.b16 %v1012, %v1008
        %v1221 = vpack.c.b16 %v1013, %v1009
        %v1222 = vpack.c.b16 %v1014, %v1010
        %v1223 = vpack.c.b16 %v1015, %v1011
        %v1224 = vpack.c.b16 %v1020, %v1016
        %v1225 = vpack.c.b16 %v1021, %v1017
        %v1226 = vpack.c.b16 %v1022, %v1018
        %v1227 = vpack.c.b16 %v1023, %v1019
        %v1228 = vpack.c.b16 %v1028, %v1024
        %v1229 = vpack.c.b16 %v1029, %v1025
        %v1230 = vpack.c.b16 %v1030, %v1026
        %v1231 = vpack.c.b16 %v1031, %v1027
        %v1232 = vpack.c.b16 %v1036, %v1032
        %v1233 = vpack.c.b16 %v1037, %v1033
        %v1234 = vpack.c.b16 %v1038, %v1034
        %v1235 = vpack.c.b16 %v1039, %v1035
        %v1236 = vpack.c.b16 %v1044, %v1040
        %v1237 = vpack.c.b16 %v1045, %v1041
        %v1238 = vpack.c.b16 %v1046, %v1042
        %v1239 = vpack.c.b16 %v1047, %v1043
        %v1240 = vpack.c.b16 %v1052, %v1048
        %v1241 = vpack.c.b16 %v1053, %v1049
        %v1242 = vpack.c.b16 %v1054, %v1050
        %v1243 = vpack.c.b16 %v1055, %v1051
        %v1244 = vpack.c.b16 %v1060, %v1056
        %v1245 = vpack.c.b16 %v1061, %v1057
        %v1246 = vpack.c.b16 %v1062, %v1058
        %v1247 = vpack.c.b16 %v1063, %v1059
        %v1248 = vpack.c.b16 %v1068, %v1064
        %v1249 = vpack.c.b16 %v1069, %v1065
        %v1250 = vpack.c.b16 %v1070, %v1066
        %v1251 = vpack.c.b16 %v1071, %v1067
        %v1252 = vpack.c.b16 %v1076, %v1072
        %v1253 = vpack.c.b16 %v1077, %v1073
        %v1254 = vpack.c.b16 %v1078, %v1074
        %v1255 = vpack.c.b16 %v1079, %v1075
        %v1256 = vpack.c.b16 %v1084, %v1080
        %v1257 = vpack.c.b16 %v1085, %v1081
        %v1258 = vpack.c.b16 %v1086, %v1082
        %v1259 = vpack.c.b16 %v1087, %v1083
        %v1260 = vpack.c.b16 %v1092, %v1088
        %v1261 = vpack.c.b16 %v1093, %v1089
        %v1262 = vpack.c.b16 %v1094, %v1090
        %v1263 = vpack.c.b16 %v1095, %v1091
        %v1264 = vpack.c.b16 %v1100, %v1096
        %v1265 = vpack.c.b16 %v1101, %v1097
        %v1266 = vpack.c.b16 %v1102, %v1098
        %v1267 = vpack.c.b16 %v1103, %v1099
        %v1268 = vpack.c.b16 %v1108, %v1104
        %v1269 = vpack.c.b16 %v1109, %v1105
        %v1270 = vpack.c.b16 %v1110, %v1106
        %v1271 = vpack.c.b16 %v1111, %v1107
        %v1272 = vpack.c.b16 %v1116, %v1112
        %v1273 = vpack.c.b16 %v1117, %v1113
        %v1274 = vpack.c.b16 %v1118, %v1114
        %v1275 = vpack.c.b16 %v1119, %v1115
        %v1276 = vpack.c.b16 %v1124, %v1120
        %v1277 = vpack.c.b16 %v1125, %v1121
        %v1278 = vpack.c.b16 %v1126, %v1122
        %v1279 = vpack.c.b16 %v1127, %v1123
        %v1280 = vpack.c.b16 %v1132, %v1128
        %v1281 = vpack.c.b16 %v1133, %v1129
        %v1282 = vpack.c.b16 %v1134, %v1130
        %v1283 = vpack.c.b16 %v1135, %v1131
        %v1284 = vpack.c.b16 %v1140, %v1136
        %v1285 = vpack.c.b16 %v1141, %v1137
        %v1286 = vpack.c.b16 %v1142, %v1138
        %v1287 = vpack.c.b16 %v1143, %v1139
        %v1288 = vpack.c.b16 %v1148, %v1144
        %v1289 = vpack.c.b16 %v1149, %v1145
        %v1290 = vpack.c.b16 %v1150, %v1146
        %v1291 = vpack.c.b16 %v1151, %v1147
        %v1292 = vpack.c.b16 %v1156, %v1152
        %v1293 = vpack.c.b16 %v1157, %v1153
        %v1294 = vpack.c.b16 %v1158, %v1154
        %v1295 = vpack.c.b16 %v1159, %v1155
        %v1296 = vpack.c.b16 %v1164, %v1160
        %v1297 = vpack.c.b16 %v1165, %v1161
        %v1298 = vpack.c.b16 %v1166, %v1162
        %v1299 = vpack.c.b16 %v1167, %v1163
        %v1300 = vpack.c.b16 %v1172, %v1168
        %v1301 = vpack.c.b16 %v1173, %v1169
        %v1302 = vpack.c.b16 %v1174, %v1170
        %v1303 = vpack.c.b16 %v1175, %v1171
        %1432 = vmatpush.bf16.msra.mxu0 %v1204
        %1433 = vmatpush.bf16.msra.mxu0 %v1200
        %1434 = vmatpush.bf16.msra.mxu0 %v1196
        %1435 = vmatpush.bf16.msra.mxu0 %v1192
        %1436 = vmatpush.bf16.msra.mxu0 %v1188
        %1437 = vmatpush.bf16.msra.mxu0 %v1184
        %1438 = vmatpush.bf16.msra.mxu0 %v1180
        %1439 = vmatpush.bf16.msra.mxu0 %v1176
        %1440 = vmatmul.bf16.gmra.mxu0 %v642
        %v1441 = vpop.f32.mrf.mxu0
        %v1442 = vadd.f32 %v784, %v1441
        %v1443 = vpop.f32.mrf.mxu0
        %v1444 = vadd.f32 %v784, %v1443
        %1445 = vmatmul.bf16.gmra.mxu0 %v646
        %v1446 = vpop.f32.mrf.mxu0
        %v1447 = vadd.f32 %v784, %v1446
        %v1448 = vpop.f32.mrf.mxu0
        %v1449 = vadd.f32 %v784, %v1448
        %1450 = vmatmul.bf16.gmra.mxu0 %v650
        %v1451 = vpop.f32.mrf.mxu0
        %v1452 = vadd.f32 %v784, %v1451
        %v1453 = vpop.f32.mrf.mxu0
        %v1454 = vadd.f32 %v784, %v1453
        %1455 = vdwg.mxu0
        %1456 = vmatpush.bf16.msra.mxu0 %v1236
        %1457 = vmatpush.bf16.msra.mxu0 %v1232
        %1458 = vmatpush.bf16.msra.mxu0 %v1228
        %1459 = vmatpush.bf16.msra.mxu0 %v1224
        %1460 = vmatpush.bf16.msra.mxu0 %v1220
        %1461 = vmatpush.bf16.msra.mxu0 %v1216
        %1462 = vmatpush.bf16.msra.mxu0 %v1212
        %1463 = vmatpush.bf16.msra.mxu0 %v1208
        %1464 = vmatmul.bf16.gmra.mxu0 %v643
        %v1465 = vpop.f32.mrf.mxu0
        %v1466 = vadd.f32 %v1442, %v1465
        %v1467 = vpop.f32.mrf.mxu0
        %v1468 = vadd.f32 %v1444, %v1467
        %1469 = vmatmul.bf16.gmra.mxu0 %v647
        %v1470 = vpop.f32.mrf.mxu0
        %v1471 = vadd.f32 %v1447, %v1470
        %v1472 = vpop.f32.mrf.mxu0
        %v1473 = vadd.f32 %v1449, %v1472
        %1474 = vmatmul.bf16.gmra.mxu0 %v651
        %v1475 = vpop.f32.mrf.mxu0
        %v1476 = vadd.f32 %v1452, %v1475
        %v1477 = vpop.f32.mrf.mxu0
        %v1478 = vadd.f32 %v1454, %v1477
        %1479 = vdwg.mxu0
        %1480 = vmatpush.bf16.msra.mxu0 %v1268
        %1481 = vmatpush.bf16.msra.mxu0 %v1264
        %1482 = vmatpush.bf16.msra.mxu0 %v1260
        %1483 = vmatpush.bf16.msra.mxu0 %v1256
        %1484 = vmatpush.bf16.msra.mxu0 %v1252
        %1485 = vmatpush.bf16.msra.mxu0 %v1248
        %1486 = vmatpush.bf16.msra.mxu0 %v1244
        %1487 = vmatpush.bf16.msra.mxu0 %v1240
        %1488 = vmatmul.bf16.gmra.mxu0 %v644
        %v1489 = vpop.f32.mrf.mxu0
        %v1490 = vadd.f32 %v1466, %v1489
        %v1491 = vpop.f32.mrf.mxu0
        %v1492 = vadd.f32 %v1468, %v1491
        %1493 = vmatmul.bf16.gmra.mxu0 %v648
        %v1494 = vpop.f32.mrf.mxu0
        %v1495 = vadd.f32 %v1471, %v1494
        %v1496 = vpop.f32.mrf.mxu0
        %v1497 = vadd.f32 %v1473, %v1496
        %1498 = vmatmul.bf16.gmra.mxu0 %v652
        %v1499 = vpop.f32.mrf.mxu0
        %v1500 = vadd.f32 %v1476, %v1499
        %v1501 = vpop.f32.mrf.mxu0
        %v1502 = vadd.f32 %v1478, %v1501
        %1503 = vdwg.mxu0
        %1504 = vmatpush.bf16.msra.mxu0 %v1300
        %1505 = vmatpush.bf16.msra.mxu0 %v1296
        %1506 = vmatpush.bf16.msra.mxu0 %v1292
        %1507 = vmatpush.bf16.msra.mxu0 %v1288
        %1508 = vmatpush.bf16.msra.mxu0 %v1284
        %1509 = vmatpush.bf16.msra.mxu0 %v1280
        %1510 = vmatpush.bf16.msra.mxu0 %v1276
        %1511 = vmatpush.bf16.msra.mxu0 %v1272
        %1512 = vmatmul.bf16.gmra.mxu0 %v645
        %v1513 = vpop.f32.mrf.mxu0
        %v1514 = vadd.f32 %v1490, %v1513
        %v1515 = vpop.f32.mrf.mxu0
        %v1516 = vadd.f32 %v1492, %v1515
        %1517 = vmatmul.bf16.gmra.mxu0 %v649
        %v1518 = vpop.f32.mrf.mxu0
        %v1519 = vadd.f32 %v1495, %v1518
        %v1520 = vpop.f32.mrf.mxu0
        %v1521 = vadd.f32 %v1497, %v1520
        %1522 = vmatmul.bf16.gmra.mxu0 %v653
        %v1523 = vpop.f32.mrf.mxu0
        %v1524 = vadd.f32 %v1500, %v1523
        %v1525 = vpop.f32.mrf.mxu0
        %v1526 = vadd.f32 %v1502, %v1525
        %1527 = vdwg.mxu0
        %1528 = vmatpush.bf16.msra.mxu0 %v1205
        %1529 = vmatpush.bf16.msra.mxu0 %v1201
        %1530 = vmatpush.bf16.msra.mxu0 %v1197
        %1531 = vmatpush.bf16.msra.mxu0 %v1193
        %1532 = vmatpush.bf16.msra.mxu0 %v1189
        %1533 = vmatpush.bf16.msra.mxu0 %v1185
        %1534 = vmatpush.bf16.msra.mxu0 %v1181
        %1535 = vmatpush.bf16.msra.mxu0 %v1177
        %1536 = vmatmul.bf16.gmra.mxu0 %v642
        %v1537 = vpop.f32.mrf.mxu0
        %v1538 = vadd.f32 %v785, %v1537
        %v1539 = vpop.f32.mrf.mxu0
        %v1540 = vadd.f32 %v785, %v1539
        %1541 = vmatmul.bf16.gmra.mxu0 %v646
        %v1542 = vpop.f32.mrf.mxu0
        %v1543 = vadd.f32 %v785, %v1542
        %v1544 = vpop.f32.mrf.mxu0
        %v1545 = vadd.f32 %v785, %v1544
        %1546 = vmatmul.bf16.gmra.mxu0 %v650
        %v1547 = vpop.f32.mrf.mxu0
        %v1548 = vadd.f32 %v785, %v1547
        %v1549 = vpop.f32.mrf.mxu0
        %v1550 = vadd.f32 %v785, %v1549
        %1551 = vdwg.mxu0
        %1552 = vmatpush.bf16.msra.mxu0 %v1237
        %1553 = vmatpush.bf16.msra.mxu0 %v1233
        %1554 = vmatpush.bf16.msra.mxu0 %v1229
        %1555 = vmatpush.bf16.msra.mxu0 %v1225
        %1556 = vmatpush.bf16.msra.mxu0 %v1221
        %1557 = vmatpush.bf16.msra.mxu0 %v1217
        %1558 = vmatpush.bf16.msra.mxu0 %v1213
        %1559 = vmatpush.bf16.msra.mxu0 %v1209
        %1560 = vmatmul.bf16.gmra.mxu0 %v643
        %v1561 = vpop.f32.mrf.mxu0
        %v1562 = vadd.f32 %v1538, %v1561
        %v1563 = vpop.f32.mrf.mxu0
        %v1564 = vadd.f32 %v1540, %v1563
        %1565 = vmatmul.bf16.gmra.mxu0 %v647
        %v1566 = vpop.f32.mrf.mxu0
        %v1567 = vadd.f32 %v1543, %v1566
        %v1568 = vpop.f32.mrf.mxu0
        %v1569 = vadd.f32 %v1545, %v1568
        %1570 = vmatmul.bf16.gmra.mxu0 %v651
        %v1571 = vpop.f32.mrf.mxu0
        %v1572 = vadd.f32 %v1548, %v1571
        %v1573 = vpop.f32.mrf.mxu0
        %v1574 = vadd.f32 %v1550, %v1573
        %1575 = vdwg.mxu0
        %1576 = vmatpush.bf16.msra.mxu0 %v1269
        %1577 = vmatpush.bf16.msra.mxu0 %v1265
        %1578 = vmatpush.bf16.msra.mxu0 %v1261
        %1579 = vmatpush.bf16.msra.mxu0 %v1257
        %1580 = vmatpush.bf16.msra.mxu0 %v1253
        %1581 = vmatpush.bf16.msra.mxu0 %v1249
        %1582 = vmatpush.bf16.msra.mxu0 %v1245
        %1583 = vmatpush.bf16.msra.mxu0 %v1241
        %1584 = vmatmul.bf16.gmra.mxu0 %v644
        %v1585 = vpop.f32.mrf.mxu0
        %v1586 = vadd.f32 %v1562, %v1585
        %v1587 = vpop.f32.mrf.mxu0
        %v1588 = vadd.f32 %v1564, %v1587
        %1589 = vmatmul.bf16.gmra.mxu0 %v648
        %v1590 = vpop.f32.mrf.mxu0
        %v1591 = vadd.f32 %v1567, %v1590
        %v1592 = vpop.f32.mrf.mxu0
        %v1593 = vadd.f32 %v1569, %v1592
        %1594 = vmatmul.bf16.gmra.mxu0 %v652
        %v1595 = vpop.f32.mrf.mxu0
        %v1596 = vadd.f32 %v1572, %v1595
        %v1597 = vpop.f32.mrf.mxu0
        %v1598 = vadd.f32 %v1574, %v1597
        %1599 = vdwg.mxu0
        %1600 = vmatpush.bf16.msra.mxu0 %v1301
        %1601 = vmatpush.bf16.msra.mxu0 %v1297
        %1602 = vmatpush.bf16.msra.mxu0 %v1293
        %1603 = vmatpush.bf16.msra.mxu0 %v1289
        %1604 = vmatpush.bf16.msra.mxu0 %v1285
        %1605 = vmatpush.bf16.msra.mxu0 %v1281
        %1606 = vmatpush.bf16.msra.mxu0 %v1277
        %1607 = vmatpush.bf16.msra.mxu0 %v1273
        %1608 = vmatmul.bf16.gmra.mxu0 %v645
        %v1609 = vpop.f32.mrf.mxu0
        %v1610 = vadd.f32 %v1586, %v1609
        %v1611 = vpop.f32.mrf.mxu0
        %v1612 = vadd.f32 %v1588, %v1611
        %1613 = vmatmul.bf16.gmra.mxu0 %v649
        %v1614 = vpop.f32.mrf.mxu0
        %v1615 = vadd.f32 %v1591, %v1614
        %v1616 = vpop.f32.mrf.mxu0
        %v1617 = vadd.f32 %v1593, %v1616
        %1618 = vmatmul.bf16.gmra.mxu0 %v653
        %v1619 = vpop.f32.mrf.mxu0
        %v1620 = vadd.f32 %v1596, %v1619
        %v1621 = vpop.f32.mrf.mxu0
        %v1622 = vadd.f32 %v1598, %v1621
        %1623 = vdwg.mxu0
        %1624 = vmatpush.bf16.msra.mxu0 %v1206
        %1625 = vmatpush.bf16.msra.mxu0 %v1202
        %1626 = vmatpush.bf16.msra.mxu0 %v1198
        %1627 = vmatpush.bf16.msra.mxu0 %v1194
        %1628 = vmatpush.bf16.msra.mxu0 %v1190
        %1629 = vmatpush.bf16.msra.mxu0 %v1186
        %1630 = vmatpush.bf16.msra.mxu0 %v1182
        %1631 = vmatpush.bf16.msra.mxu0 %v1178
        %1632 = vmatmul.bf16.gmra.mxu0 %v642
        %v1633 = vpop.f32.mrf.mxu0
        %v1634 = vadd.f32 %v786, %v1633
        %v1635 = vpop.f32.mrf.mxu0
        %v1636 = vadd.f32 %v786, %v1635
        %1637 = vmatmul.bf16.gmra.mxu0 %v646
        %v1638 = vpop.f32.mrf.mxu0
        %v1639 = vadd.f32 %v786, %v1638
        %v1640 = vpop.f32.mrf.mxu0
        %v1641 = vadd.f32 %v786, %v1640
        %1642 = vmatmul.bf16.gmra.mxu0 %v650
        %v1643 = vpop.f32.mrf.mxu0
        %v1644 = vadd.f32 %v786, %v1643
        %v1645 = vpop.f32.mrf.mxu0
        %v1646 = vadd.f32 %v786, %v1645
        %1647 = vdwg.mxu0
        %1648 = vmatpush.bf16.msra.mxu0 %v1238
        %1649 = vmatpush.bf16.msra.mxu0 %v1234
        %1650 = vmatpush.bf16.msra.mxu0 %v1230
        %1651 = vmatpush.bf16.msra.mxu0 %v1226
        %1652 = vmatpush.bf16.msra.mxu0 %v1222
        %1653 = vmatpush.bf16.msra.mxu0 %v1218
        %1654 = vmatpush.bf16.msra.mxu0 %v1214
        %1655 = vmatpush.bf16.msra.mxu0 %v1210
        %1656 = vmatmul.bf16.gmra.mxu0 %v643
        %v1657 = vpop.f32.mrf.mxu0
        %v1658 = vadd.f32 %v1634, %v1657
        %v1659 = vpop.f32.mrf.mxu0
        %v1660 = vadd.f32 %v1636, %v1659
        %1661 = vmatmul.bf16.gmra.mxu0 %v647
        %v1662 = vpop.f32.mrf.mxu0
        %v1663 = vadd.f32 %v1639, %v1662
        %v1664 = vpop.f32.mrf.mxu0
        %v1665 = vadd.f32 %v1641, %v1664
        %1666 = vmatmul.bf16.gmra.mxu0 %v651
        %v1667 = vpop.f32.mrf.mxu0
        %v1668 = vadd.f32 %v1644, %v1667
        %v1669 = vpop.f32.mrf.mxu0
        %v1670 = vadd.f32 %v1646, %v1669
        %1671 = vdwg.mxu0
        %1672 = vmatpush.bf16.msra.mxu0 %v1270
        %1673 = vmatpush.bf16.msra.mxu0 %v1266
        %1674 = vmatpush.bf16.msra.mxu0 %v1262
        %1675 = vmatpush.bf16.msra.mxu0 %v1258
        %1676 = vmatpush.bf16.msra.mxu0 %v1254
        %1677 = vmatpush.bf16.msra.mxu0 %v1250
        %1678 = vmatpush.bf16.msra.mxu0 %v1246
        %1679 = vmatpush.bf16.msra.mxu0 %v1242
        %1680 = vmatmul.bf16.gmra.mxu0 %v644
        %v1681 = vpop.f32.mrf.mxu0
        %v1682 = vadd.f32 %v1658, %v1681
        %v1683 = vpop.f32.mrf.mxu0
        %v1684 = vadd.f32 %v1660, %v1683
        %1685 = vmatmul.bf16.gmra.mxu0 %v648
        %v1686 = vpop.f32.mrf.mxu0
        %v1687 = vadd.f32 %v1663, %v1686
        %v1688 = vpop.f32.mrf.mxu0
        %v1689 = vadd.f32 %v1665, %v1688
        %1690 = vmatmul.bf16.gmra.mxu0 %v652
        %v1691 = vpop.f32.mrf.mxu0
        %v1692 = vadd.f32 %v1668, %v1691
        %v1693 = vpop.f32.mrf.mxu0
        %v1694 = vadd.f32 %v1670, %v1693
        %1695 = vdwg.mxu0
        %1696 = vmatpush.bf16.msra.mxu0 %v1302
        %1697 = vmatpush.bf16.msra.mxu0 %v1298
        %1698 = vmatpush.bf16.msra.mxu0 %v1294
        %1699 = vmatpush.bf16.msra.mxu0 %v1290
        %1700 = vmatpush.bf16.msra.mxu0 %v1286
        %1701 = vmatpush.bf16.msra.mxu0 %v1282
        %1702 = vmatpush.bf16.msra.mxu0 %v1278
        %1703 = vmatpush.bf16.msra.mxu0 %v1274
        %1704 = vmatmul.bf16.gmra.mxu0 %v645
        %v1705 = vpop.f32.mrf.mxu0
        %v1706 = vadd.f32 %v1682, %v1705
        %v1707 = vpop.f32.mrf.mxu0
        %v1708 = vadd.f32 %v1684, %v1707
        %1709 = vmatmul.bf16.gmra.mxu0 %v649
        %v1710 = vpop.f32.mrf.mxu0
        %v1711 = vadd.f32 %v1687, %v1710
        %v1712 = vpop.f32.mrf.mxu0
        %v1713 = vadd.f32 %v1689, %v1712
        %1714 = vmatmul.bf16.gmra.mxu0 %v653
        %v1715 = vpop.f32.mrf.mxu0
        %v1716 = vadd.f32 %v1692, %v1715
        %v1717 = vpop.f32.mrf.mxu0
        %v1718 = vadd.f32 %v1694, %v1717
        %1719 = vdwg.mxu0
        %1720 = vmatpush.bf16.msra.mxu0 %v1207
        %1721 = vmatpush.bf16.msra.mxu0 %v1203
        %1722 = vmatpush.bf16.msra.mxu0 %v1199
        %1723 = vmatpush.bf16.msra.mxu0 %v1195
        %1724 = vmatpush.bf16.msra.mxu0 %v1191
        %1725 = vmatpush.bf16.msra.mxu0 %v1187
        %1726 = vmatpush.bf16.msra.mxu0 %v1183
        %1727 = vmatpush.bf16.msra.mxu0 %v1179
        %1728 = vmatmul.bf16.gmra.mxu0 %v642
        %v1729 = vpop.f32.mrf.mxu0
        %v1730 = vadd.f32 %v787, %v1729
        %v1731 = vpop.f32.mrf.mxu0
        %v1732 = vadd.f32 %v787, %v1731
        %1733 = vmatmul.bf16.gmra.mxu0 %v646
        %v1734 = vpop.f32.mrf.mxu0
        %v1735 = vadd.f32 %v787, %v1734
        %v1736 = vpop.f32.mrf.mxu0
        %v1737 = vadd.f32 %v787, %v1736
        %1738 = vmatmul.bf16.gmra.mxu0 %v650
        %v1739 = vpop.f32.mrf.mxu0
        %v1740 = vadd.f32 %v787, %v1739
        %v1741 = vpop.f32.mrf.mxu0
        %v1742 = vadd.f32 %v787, %v1741
        %1743 = vdwg.mxu0
        %1744 = vmatpush.bf16.msra.mxu0 %v1239
        %1745 = vmatpush.bf16.msra.mxu0 %v1235
        %1746 = vmatpush.bf16.msra.mxu0 %v1231
        %1747 = vmatpush.bf16.msra.mxu0 %v1227
        %1748 = vmatpush.bf16.msra.mxu0 %v1223
        %1749 = vmatpush.bf16.msra.mxu0 %v1219
        %1750 = vmatpush.bf16.msra.mxu0 %v1215
        %1751 = vmatpush.bf16.msra.mxu0 %v1211
        %1752 = vmatmul.bf16.gmra.mxu0 %v643
        %v1753 = vpop.f32.mrf.mxu0
        %v1754 = vadd.f32 %v1730, %v1753
        %v1755 = vpop.f32.mrf.mxu0
        %v1756 = vadd.f32 %v1732, %v1755
        %1757 = vmatmul.bf16.gmra.mxu0 %v647
        %v1758 = vpop.f32.mrf.mxu0
        %v1759 = vadd.f32 %v1735, %v1758
        %v1760 = vpop.f32.mrf.mxu0
        %v1761 = vadd.f32 %v1737, %v1760
        %1762 = vmatmul.bf16.gmra.mxu0 %v651
        %v1763 = vpop.f32.mrf.mxu0
        %v1764 = vadd.f32 %v1740, %v1763
        %v1765 = vpop.f32.mrf.mxu0
        %v1766 = vadd.f32 %v1742, %v1765
        %1767 = vdwg.mxu0
        %1768 = vmatpush.bf16.msra.mxu0 %v1271
        %1769 = vmatpush.bf16.msra.mxu0 %v1267
        %1770 = vmatpush.bf16.msra.mxu0 %v1263
        %1771 = vmatpush.bf16.msra.mxu0 %v1259
        %1772 = vmatpush.bf16.msra.mxu0 %v1255
        %1773 = vmatpush.bf16.msra.mxu0 %v1251
        %1774 = vmatpush.bf16.msra.mxu0 %v1247
        %1775 = vmatpush.bf16.msra.mxu0 %v1243
        %1776 = vmatmul.bf16.gmra.mxu0 %v644
        %v1777 = vpop.f32.mrf.mxu0
        %v1778 = vadd.f32 %v1754, %v1777
        %v1779 = vpop.f32.mrf.mxu0
        %v1780 = vadd.f32 %v1756, %v1779
        %1781 = vmatmul.bf16.gmra.mxu0 %v648
        %v1782 = vpop.f32.mrf.mxu0
        %v1783 = vadd.f32 %v1759, %v1782
        %v1784 = vpop.f32.mrf.mxu0
        %v1785 = vadd.f32 %v1761, %v1784
        %1786 = vmatmul.bf16.gmra.mxu0 %v652
        %v1787 = vpop.f32.mrf.mxu0
        %v1788 = vadd.f32 %v1764, %v1787
        %v1789 = vpop.f32.mrf.mxu0
        %v1790 = vadd.f32 %v1766, %v1789
        %1791 = vdwg.mxu0
        %1792 = vmatpush.bf16.msra.mxu0 %v1303
        %1793 = vmatpush.bf16.msra.mxu0 %v1299
        %1794 = vmatpush.bf16.msra.mxu0 %v1295
        %1795 = vmatpush.bf16.msra.mxu0 %v1291
        %1796 = vmatpush.bf16.msra.mxu0 %v1287
        %1797 = vmatpush.bf16.msra.mxu0 %v1283
        %1798 = vmatpush.bf16.msra.mxu0 %v1279
        %1799 = vmatpush.bf16.msra.mxu0 %v1275
        %1800 = vmatmul.bf16.gmra.mxu0 %v645
        %v1801 = vpop.f32.mrf.mxu0
        %v1802 = vadd.f32 %v1778, %v1801
        %v1803 = vpop.f32.mrf.mxu0
        %v1804 = vadd.f32 %v1780, %v1803
        %1805 = vmatmul.bf16.gmra.mxu0 %v649
        %v1806 = vpop.f32.mrf.mxu0
        %v1807 = vadd.f32 %v1783, %v1806
        %v1808 = vpop.f32.mrf.mxu0
        %v1809 = vadd.f32 %v1785, %v1808
        %1810 = vmatmul.bf16.gmra.mxu0 %v653
        %v1811 = vpop.f32.mrf.mxu0
        %v1812 = vadd.f32 %v1788, %v1811
        %v1813 = vpop.f32.mrf.mxu0
        %v1814 = vadd.f32 %v1790, %v1813
        %1815 = vdwg.mxu0
        %vm1816 = vcmp.gt.f32.partialorder %v1514, 0.0
        %vm1817 = vcmp.gt.f32.partialorder %v1610, 0.0
        %vm1818 = vcmp.gt.f32.partialorder %v1706, 0.0
        %vm1819 = vcmp.gt.f32.partialorder %v1802, 0.0
        %vm1820 = vcmp.gt.f32.partialorder %v1516, 0.0
        %vm1821 = vcmp.gt.f32.partialorder %v1612, 0.0
        %vm1822 = vcmp.gt.f32.partialorder %v1708, 0.0
        %vm1823 = vcmp.gt.f32.partialorder %v1804, 0.0
        %vm1824 = vcmp.gt.f32.partialorder %v1519, 0.0
        %vm1825 = vcmp.gt.f32.partialorder %v1615, 0.0
        %vm1826 = vcmp.gt.f32.partialorder %v1711, 0.0
        %vm1827 = vcmp.gt.f32.partialorder %v1807, 0.0
        %vm1828 = vcmp.gt.f32.partialorder %v1521, 0.0
        %vm1829 = vcmp.gt.f32.partialorder %v1617, 0.0
        %vm1830 = vcmp.gt.f32.partialorder %v1713, 0.0
        %vm1831 = vcmp.gt.f32.partialorder %v1809, 0.0
        %vm1832 = vcmp.gt.f32.partialorder %v1524, 0.0
        %vm1833 = vcmp.gt.f32.partialorder %v1620, 0.0
        %vm1834 = vcmp.gt.f32.partialorder %v1716, 0.0
        %vm1835 = vcmp.gt.f32.partialorder %v1812, 0.0
        %vm1836 = vcmp.gt.f32.partialorder %v1526, 0.0
        %vm1837 = vcmp.gt.f32.partialorder %v1622, 0.0
        %vm1838 = vcmp.gt.f32.partialorder %v1718, 0.0
        %vm1839 = vcmp.gt.f32.partialorder %v1814, 0.0
        %v1840 = vmul.f32 %v1514, 0.2
        %v1841 = vmul.f32 %v1610, 0.2
        %v1842 = vmul.f32 %v1706, 0.2
        %v1843 = vmul.f32 %v1802, 0.2
        %v1844 = vmul.f32 %v1516, 0.2
        %v1845 = vmul.f32 %v1612, 0.2
        %v1846 = vmul.f32 %v1708, 0.2
        %v1847 = vmul.f32 %v1804, 0.2
        %v1848 = vmul.f32 %v1519, 0.2
        %v1849 = vmul.f32 %v1615, 0.2
        %v1850 = vmul.f32 %v1711, 0.2
        %v1851 = vmul.f32 %v1807, 0.2
        %v1852 = vmul.f32 %v1521, 0.2
        %v1853 = vmul.f32 %v1617, 0.2
        %v1854 = vmul.f32 %v1713, 0.2
        %v1855 = vmul.f32 %v1809, 0.2
        %v1856 = vmul.f32 %v1524, 0.2
        %v1857 = vmul.f32 %v1620, 0.2
        %v1858 = vmul.f32 %v1716, 0.2
        %v1859 = vmul.f32 %v1812, 0.2
        %v1860 = vmul.f32 %v1526, 0.2
        %v1861 = vmul.f32 %v1622, 0.2
        %v1862 = vmul.f32 %v1718, 0.2
        %v1863 = vmul.f32 %v1814, 0.2
        %v1864 = vsel %vm1816, %v1514, %v1840
        %v1865 = vsel %vm1817, %v1610, %v1841
        %v1866 = vsel %vm1818, %v1706, %v1842
        %v1867 = vsel %vm1819, %v1802, %v1843
        %v1868 = vsel %vm1820, %v1516, %v1844
        %v1869 = vsel %vm1821, %v1612, %v1845
        %v1870 = vsel %vm1822, %v1708, %v1846
        %v1871 = vsel %vm1823, %v1804, %v1847
        %v1872 = vsel %vm1824, %v1519, %v1848
        %v1873 = vsel %vm1825, %v1615, %v1849
        %v1874 = vsel %vm1826, %v1711, %v1850
        %v1875 = vsel %vm1827, %v1807, %v1851
        %v1876 = vsel %vm1828, %v1521, %v1852
        %v1877 = vsel %vm1829, %v1617, %v1853
        %v1878 = vsel %vm1830, %v1713, %v1854
        %v1879 = vsel %vm1831, %v1809, %v1855
        %v1880 = vsel %vm1832, %v1524, %v1856
        %v1881 = vsel %vm1833, %v1620, %v1857
        %v1882 = vsel %vm1834, %v1716, %v1858
        %v1883 = vsel %vm1835, %v1812, %v1859
        %v1884 = vsel %vm1836, %v1526, %v1860
        %v1885 = vsel %vm1837, %v1622, %v1861
        %v1886 = vsel %vm1838, %v1718, %v1862
        %v1887 = vsel %vm1839, %v1814, %v1863
        %v1888 = vpack.c.bf16 %v1868, %v1864
        %v1889 = vpack.c.bf16 %v1869, %v1865
        %v1890 = vpack.c.bf16 %v1870, %v1866
        %v1891 = vpack.c.bf16 %v1871, %v1867
        %v1892 = vpack.c.bf16 %v1876, %v1872
        %v1893 = vpack.c.bf16 %v1877, %v1873
        %v1894 = vpack.c.bf16 %v1878, %v1874
        %v1895 = vpack.c.bf16 %v1879, %v1875
        %v1896 = vpack.c.bf16 %v1884, %v1880
        %v1897 = vpack.c.bf16 %v1885, %v1881
        %v1898 = vpack.c.bf16 %v1886, %v1882
        %v1899 = vpack.c.bf16 %v1887, %v1883
        %v1900 = vld [vmem:[#allocation5] sm:$0xff]
        %v1901 = vld [vmem:[#allocation5 + $0x8] sm:$0xff]
        %v1902 = vld [vmem:[#allocation5 + $0x10] sm:$0xff]
        %v1903 = vld [vmem:[#allocation5 + $0x18] sm:$0xff]
        %v1904 = vld [vmem:[#allocation5 + $0x20] sm:$0xff]
        %v1905 = vld [vmem:[#allocation5 + $0x28] sm:$0xff]
        %v1906 = vld [vmem:[#allocation5 + $0x30] sm:$0xff]
        %v1907 = vld [vmem:[#allocation5 + $0x38] sm:$0xff]
        %v1908 = vld [vmem:[#allocation5 + $0x40] sm:$0xff]
        %v1909 = vld [vmem:[#allocation5 + $0x48] sm:$0xff]
        %v1910 = vld [vmem:[#allocation5 + $0x50] sm:$0xff]
        %v1911 = vld [vmem:[#allocation5 + $0x58] sm:$0xff]
        %v1912 = vld [vmem:[#allocation5 + $0x60] sm:$0xff]
        %v1913 = vld [vmem:[#allocation5 + $0x68] sm:$0xff]
        %v1914 = vld [vmem:[#allocation5 + $0x70] sm:$0xff]
        %v1915 = vld [vmem:[#allocation5 + $0x78] sm:$0xff]
        %v1916 = vld [vmem:[#allocation5 + $0x80] sm:$0xff]
        %v1917 = vld [vmem:[#allocation5 + $0x88] sm:$0xff]
        %v1918 = vld [vmem:[#allocation5 + $0x90] sm:$0xff]
        %v1919 = vld [vmem:[#allocation5 + $0x98] sm:$0xff]
        %v1920 = vld [vmem:[#allocation5 + $0xa0] sm:$0xff]
        %v1921 = vld [vmem:[#allocation5 + $0xa8] sm:$0xff]
        %v1922 = vld [vmem:[#allocation5 + $0xb0] sm:$0xff]
        %v1923 = vld [vmem:[#allocation5 + $0xb8] sm:$0xff]
        %v1924 = vld [vmem:[#allocation5 + $0xc0] sm:$0xff]
        %v1925 = vld [vmem:[#allocation5 + $0xc8] sm:$0xff]
        %v1926 = vld [vmem:[#allocation5 + $0xd0] sm:$0xff]
        %v1927 = vld [vmem:[#allocation5 + $0xd8] sm:$0xff]
        %v1928 = vld [vmem:[#allocation5 + $0xe0] sm:$0xff]
        %v1929 = vld [vmem:[#allocation5 + $0xe8] sm:$0xff]
        %v1930 = vld [vmem:[#allocation5 + $0xf0] sm:$0xff]
        %v1931 = vld [vmem:[#allocation5 + $0xf8] sm:$0xff]
        %v1932 = vld [vmem:[#allocation5 + $0x100] sm:$0xff]
        %v1933 = vld [vmem:[#allocation5 + $0x108] sm:$0xff]
        %v1934 = vld [vmem:[#allocation5 + $0x110] sm:$0xff]
        %v1935 = vld [vmem:[#allocation5 + $0x118] sm:$0xff]
        %v1936 = vld [vmem:[#allocation5 + $0x120] sm:$0xff]
        %v1937 = vld [vmem:[#allocation5 + $0x128] sm:$0xff]
        %v1938 = vld [vmem:[#allocation5 + $0x130] sm:$0xff]
        %v1939 = vld [vmem:[#allocation5 + $0x138] sm:$0xff]
        %v1940 = vld [vmem:[#allocation5 + $0x140] sm:$0xff]
        %v1941 = vld [vmem:[#allocation5 + $0x148] sm:$0xff]
        %v1942 = vld [vmem:[#allocation5 + $0x150] sm:$0xff]
        %v1943 = vld [vmem:[#allocation5 + $0x158] sm:$0xff]
        %v1944 = vld [vmem:[#allocation5 + $0x160] sm:$0xff]
        %v1945 = vld [vmem:[#allocation5 + $0x168] sm:$0xff]
        %v1946 = vld [vmem:[#allocation5 + $0x170] sm:$0xff]
        %v1947 = vld [vmem:[#allocation5 + $0x178] sm:$0xff]
        %v1948 = vld [vmem:[#allocation5 + $0x180] sm:$0xff]
        %v1949 = vld [vmem:[#allocation5 + $0x188] sm:$0xff]
        %v1950 = vld [vmem:[#allocation5 + $0x190] sm:$0xff]
        %v1951 = vld [vmem:[#allocation5 + $0x198] sm:$0xff]
        %v1952 = vld [vmem:[#allocation5 + $0x1a0] sm:$0xff]
        %v1953 = vld [vmem:[#allocation5 + $0x1a8] sm:$0xff]
        %v1954 = vld [vmem:[#allocation5 + $0x1b0] sm:$0xff]
        %v1955 = vld [vmem:[#allocation5 + $0x1b8] sm:$0xff]
        %v1956 = vld [vmem:[#allocation5 + $0x1c0] sm:$0xff]
        %v1957 = vld [vmem:[#allocation5 + $0x1c8] sm:$0xff]
        %v1958 = vld [vmem:[#allocation5 + $0x1d0] sm:$0xff]
        %v1959 = vld [vmem:[#allocation5 + $0x1d8] sm:$0xff]
        %v1960 = vld [vmem:[#allocation5 + $0x1e0] sm:$0xff]
        %v1961 = vld [vmem:[#allocation5 + $0x1e8] sm:$0xff]
        %v1962 = vld [vmem:[#allocation5 + $0x1f0] sm:$0xff]
        %v1963 = vld [vmem:[#allocation5 + $0x1f8] sm:$0xff]
        %v1964 = vld [vmem:[%s6] sm:$0x3]
        %v1966 = vperm.slane %v1964, 0
        %v1967 = vperm.slane %v1964, 1
        %v2034 = vunpack.c.l.b16 %v1900
        %v2035 = vunpack.c.h.b16 %v1900
        %v2036 = vunpack.c.l.b16 %v1901
        %v2037 = vunpack.c.h.b16 %v1901
        %v2038 = vunpack.c.l.b16 %v1902
        %v2039 = vunpack.c.h.b16 %v1902
        %v2040 = vunpack.c.l.b16 %v1903
        %v2041 = vunpack.c.h.b16 %v1903
        %v2042 = vunpack.c.l.b16 %v1904
        %v2043 = vunpack.c.h.b16 %v1904
        %v2044 = vunpack.c.l.b16 %v1905
        %v2045 = vunpack.c.h.b16 %v1905
        %v2046 = vunpack.c.l.b16 %v1906
        %v2047 = vunpack.c.h.b16 %v1906
        %v2048 = vunpack.c.l.b16 %v1907
        %v2049 = vunpack.c.h.b16 %v1907
        %v2050 = vunpack.c.l.b16 %v1908
        %v2051 = vunpack.c.h.b16 %v1908
        %v2052 = vunpack.c.l.b16 %v1909
        %v2053 = vunpack.c.h.b16 %v1909
        %v2054 = vunpack.c.l.b16 %v1910
        %v2055 = vunpack.c.h.b16 %v1910
        %v2056 = vunpack.c.l.b16 %v1911
        %v2057 = vunpack.c.h.b16 %v1911
        %v2058 = vunpack.c.l.b16 %v1912
        %v2059 = vunpack.c.h.b16 %v1912
        %v2060 = vunpack.c.l.b16 %v1913
        %v2061 = vunpack.c.h.b16 %v1913
        %v2062 = vunpack.c.l.b16 %v1914
        %v2063 = vunpack.c.h.b16 %v1914
        %v2064 = vunpack.c.l.b16 %v1915
        %v2065 = vunpack.c.h.b16 %v1915
        %v2066 = vunpack.c.l.b16 %v1916
        %v2067 = vunpack.c.h.b16 %v1916
        %v2068 = vunpack.c.l.b16 %v1917
        %v2069 = vunpack.c.h.b16 %v1917
        %v2070 = vunpack.c.l.b16 %v1918
        %v2071 = vunpack.c.h.b16 %v1918
        %v2072 = vunpack.c.l.b16 %v1919
        %v2073 = vunpack.c.h.b16 %v1919
        %v2074 = vunpack.c.l.b16 %v1920
        %v2075 = vunpack.c.h.b16 %v1920
        %v2076 = vunpack.c.l.b16 %v1921
        %v2077 = vunpack.c.h.b16 %v1921
        %v2078 = vunpack.c.l.b16 %v1922
        %v2079 = vunpack.c.h.b16 %v1922
        %v2080 = vunpack.c.l.b16 %v1923
        %v2081 = vunpack.c.h.b16 %v1923
        %v2082 = vunpack.c.l.b16 %v1924
        %v2083 = vunpack.c.h.b16 %v1924
        %v2084 = vunpack.c.l.b16 %v1925
        %v2085 = vunpack.c.h.b16 %v1925
        %v2086 = vunpack.c.l.b16 %v1926
        %v2087 = vunpack.c.h.b16 %v1926
        %v2088 = vunpack.c.l.b16 %v1927
        %v2089 = vunpack.c.h.b16 %v1927
        %v2090 = vunpack.c.l.b16 %v1928
        %v2091 = vunpack.c.h.b16 %v1928
        %v2092 = vunpack.c.l.b16 %v1929
        %v2093 = vunpack.c.h.b16 %v1929
        %v2094 = vunpack.c.l.b16 %v1930
        %v2095 = vunpack.c.h.b16 %v1930
        %v2096 = vunpack.c.l.b16 %v1931
        %v2097 = vunpack.c.h.b16 %v1931
        %v2098 = vunpack.c.l.b16 %v1932
        %v2099 = vunpack.c.h.b16 %v1932
        %v2100 = vunpack.c.l.b16 %v1933
        %v2101 = vunpack.c.h.b16 %v1933
        %v2102 = vunpack.c.l.b16 %v1934
        %v2103 = vunpack.c.h.b16 %v1934
        %v2104 = vunpack.c.l.b16 %v1935
        %v2105 = vunpack.c.h.b16 %v1935
        %v2106 = vunpack.c.l.b16 %v1936
        %v2107 = vunpack.c.h.b16 %v1936
        %v2108 = vunpack.c.l.b16 %v1937
        %v2109 = vunpack.c.h.b16 %v1937
        %v2110 = vunpack.c.l.b16 %v1938
        %v2111 = vunpack.c.h.b16 %v1938
        %v2112 = vunpack.c.l.b16 %v1939
        %v2113 = vunpack.c.h.b16 %v1939
        %v2114 = vunpack.c.l.b16 %v1940
        %v2115 = vunpack.c.h.b16 %v1940
        %v2116 = vunpack.c.l.b16 %v1941
        %v2117 = vunpack.c.h.b16 %v1941
        %v2118 = vunpack.c.l.b16 %v1942
        %v2119 = vunpack.c.h.b16 %v1942
        %v2120 = vunpack.c.l.b16 %v1943
        %v2121 = vunpack.c.h.b16 %v1943
        %v2122 = vunpack.c.l.b16 %v1944
        %v2123 = vunpack.c.h.b16 %v1944
        %v2124 = vunpack.c.l.b16 %v1945
        %v2125 = vunpack.c.h.b16 %v1945
        %v2126 = vunpack.c.l.b16 %v1946
        %v2127 = vunpack.c.h.b16 %v1946
        %v2128 = vunpack.c.l.b16 %v1947
        %v2129 = vunpack.c.h.b16 %v1947
        %v2130 = vunpack.c.l.b16 %v1948
        %v2131 = vunpack.c.h.b16 %v1948
        %v2132 = vunpack.c.l.b16 %v1949
        %v2133 = vunpack.c.h.b16 %v1949
        %v2134 = vunpack.c.l.b16 %v1950
        %v2135 = vunpack.c.h.b16 %v1950
        %v2136 = vunpack.c.l.b16 %v1951
        %v2137 = vunpack.c.h.b16 %v1951
        %v2138 = vunpack.c.l.b16 %v1952
        %v2139 = vunpack.c.h.b16 %v1952
        %v2140 = vunpack.c.l.b16 %v1953
        %v2141 = vunpack.c.h.b16 %v1953
        %v2142 = vunpack.c.l.b16 %v1954
        %v2143 = vunpack.c.h.b16 %v1954
        %v2144 = vunpack.c.l.b16 %v1955
        %v2145 = vunpack.c.h.b16 %v1955
        %v2146 = vunpack.c.l.b16 %v1956
        %v2147 = vunpack.c.h.b16 %v1956
        %v2148 = vunpack.c.l.b16 %v1957
        %v2149 = vunpack.c.h.b16 %v1957
        %v2150 = vunpack.c.l.b16 %v1958
        %v2151 = vunpack.c.h.b16 %v1958
        %v2152 = vunpack.c.l.b16 %v1959
        %v2153 = vunpack.c.h.b16 %v1959
        %v2154 = vunpack.c.l.b16 %v1960
        %v2155 = vunpack.c.h.b16 %v1960
        %v2156 = vunpack.c.l.b16 %v1961
        %v2157 = vunpack.c.h.b16 %v1961
        %v2158 = vunpack.c.l.b16 %v1962
        %v2159 = vunpack.c.h.b16 %v1962
        %v2160 = vunpack.c.l.b16 %v1963
        %v2161 = vunpack.c.h.b16 %v1963
        %v2162 = vpack.c.b16 %v2036, %v2034
        %v2163 = vpack.c.b16 %v2037, %v2035
        %v2164 = vpack.c.b16 %v2040, %v2038
        %v2165 = vpack.c.b16 %v2041, %v2039
        %v2166 = vpack.c.b16 %v2044, %v2042
        %v2167 = vpack.c.b16 %v2045, %v2043
        %v2168 = vpack.c.b16 %v2048, %v2046
        %v2169 = vpack.c.b16 %v2049, %v2047
        %v2170 = vpack.c.b16 %v2052, %v2050
        %v2171 = vpack.c.b16 %v2053, %v2051
        %v2172 = vpack.c.b16 %v2056, %v2054
        %v2173 = vpack.c.b16 %v2057, %v2055
        %v2174 = vpack.c.b16 %v2060, %v2058
        %v2175 = vpack.c.b16 %v2061, %v2059
        %v2176 = vpack.c.b16 %v2064, %v2062
        %v2177 = vpack.c.b16 %v2065, %v2063
        %v2178 = vpack.c.b16 %v2068, %v2066
        %v2179 = vpack.c.b16 %v2069, %v2067
        %v2180 = vpack.c.b16 %v2072, %v2070
        %v2181 = vpack.c.b16 %v2073, %v2071
        %v2182 = vpack.c.b16 %v2076, %v2074
        %v2183 = vpack.c.b16 %v2077, %v2075
        %v2184 = vpack.c.b16 %v2080, %v2078
        %v2185 = vpack.c.b16 %v2081, %v2079
        %v2186 = vpack.c.b16 %v2084, %v2082
        %v2187 = vpack.c.b16 %v2085, %v2083
        %v2188 = vpack.c.b16 %v2088, %v2086
        %v2189 = vpack.c.b16 %v2089, %v2087
        %v2190 = vpack.c.b16 %v2092, %v2090
        %v2191 = vpack.c.b16 %v2093, %v2091
        %v2192 = vpack.c.b16 %v2096, %v2094
        %v2193 = vpack.c.b16 %v2097, %v2095
        %v2194 = vpack.c.b16 %v2100, %v2098
        %v2195 = vpack.c.b16 %v2101, %v2099
        %v2196 = vpack.c.b16 %v2104, %v2102
        %v2197 = vpack.c.b16 %v2105, %v2103
        %v2198 = vpack.c.b16 %v2108, %v2106
        %v2199 = vpack.c.b16 %v2109, %v2107
        %v2200 = vpack.c.b16 %v2112, %v2110
        %v2201 = vpack.c.b16 %v2113, %v2111
        %v2202 = vpack.c.b16 %v2116, %v2114
        %v2203 = vpack.c.b16 %v2117, %v2115
        %v2204 = vpack.c.b16 %v2120, %v2118
        %v2205 = vpack.c.b16 %v2121, %v2119
        %v2206 = vpack.c.b16 %v2124, %v2122
        %v2207 = vpack.c.b16 %v2125, %v2123
        %v2208 = vpack.c.b16 %v2128, %v2126
        %v2209 = vpack.c.b16 %v2129, %v2127
        %v2210 = vpack.c.b16 %v2132, %v2130
        %v2211 = vpack.c.b16 %v2133, %v2131
        %v2212 = vpack.c.b16 %v2136, %v2134
        %v2213 = vpack.c.b16 %v2137, %v2135
        %v2214 = vpack.c.b16 %v2140, %v2138
        %v2215 = vpack.c.b16 %v2141, %v2139
        %v2216 = vpack.c.b16 %v2144, %v2142
        %v2217 = vpack.c.b16 %v2145, %v2143
        %v2218 = vpack.c.b16 %v2148, %v2146
        %v2219 = vpack.c.b16 %v2149, %v2147
        %v2220 = vpack.c.b16 %v2152, %v2150
        %v2221 = vpack.c.b16 %v2153, %v2151
        %v2222 = vpack.c.b16 %v2156, %v2154
        %v2223 = vpack.c.b16 %v2157, %v2155
        %v2224 = vpack.c.b16 %v2160, %v2158
        %v2225 = vpack.c.b16 %v2161, %v2159
        %2290 = vmatpush.bf16.msra.mxu0 %v2176
        %2291 = vmatpush.bf16.msra.mxu0 %v2174
        %2292 = vmatpush.bf16.msra.mxu0 %v2172
        %2293 = vmatpush.bf16.msra.mxu0 %v2170
        %2294 = vmatpush.bf16.msra.mxu0 %v2168
        %2295 = vmatpush.bf16.msra.mxu0 %v2166
        %2296 = vmatpush.bf16.msra.mxu0 %v2164
        %2297 = vmatpush.bf16.msra.mxu0 %v2162
        %2298 = vmatmul.bf16.gmra.mxu0 %v1888
        %v2299 = vpop.f32.mrf.mxu0
        %v2300 = vadd.f32 %v1966, %v2299
        %v2301 = vpop.f32.mrf.mxu0
        %v2302 = vadd.f32 %v1966, %v2301
        %2303 = vmatmul.bf16.gmra.mxu0 %v1892
        %v2304 = vpop.f32.mrf.mxu0
        %v2305 = vadd.f32 %v1966, %v2304
        %v2306 = vpop.f32.mrf.mxu0
        %v2307 = vadd.f32 %v1966, %v2306
        %2308 = vmatmul.bf16.gmra.mxu0 %v1896
        %v2309 = vpop.f32.mrf.mxu0
        %v2310 = vadd.f32 %v1966, %v2309
        %v2311 = vpop.f32.mrf.mxu0
        %v2312 = vadd.f32 %v1966, %v2311
        %2313 = vdwg.mxu0
        %2314 = vmatpush.bf16.msra.mxu0 %v2192
        %2315 = vmatpush.bf16.msra.mxu0 %v2190
        %2316 = vmatpush.bf16.msra.mxu0 %v2188
        %2317 = vmatpush.bf16.msra.mxu0 %v2186
        %2318 = vmatpush.bf16.msra.mxu0 %v2184
        %2319 = vmatpush.bf16.msra.mxu0 %v2182
        %2320 = vmatpush.bf16.msra.mxu0 %v2180
        %2321 = vmatpush.bf16.msra.mxu0 %v2178
        %2322 = vmatmul.bf16.gmra.mxu0 %v1889
        %v2323 = vpop.f32.mrf.mxu0
        %v2324 = vadd.f32 %v2300, %v2323
        %v2325 = vpop.f32.mrf.mxu0
        %v2326 = vadd.f32 %v2302, %v2325
        %2327 = vmatmul.bf16.gmra.mxu0 %v1893
        %v2328 = vpop.f32.mrf.mxu0
        %v2329 = vadd.f32 %v2305, %v2328
        %v2330 = vpop.f32.mrf.mxu0
        %v2331 = vadd.f32 %v2307, %v2330
        %2332 = vmatmul.bf16.gmra.mxu0 %v1897
        %v2333 = vpop.f32.mrf.mxu0
        %v2334 = vadd.f32 %v2310, %v2333
        %v2335 = vpop.f32.mrf.mxu0
        %v2336 = vadd.f32 %v2312, %v2335
        %2337 = vdwg.mxu0
        %2338 = vmatpush.bf16.msra.mxu0 %v2208
        %2339 = vmatpush.bf16.msra.mxu0 %v2206
        %2340 = vmatpush.bf16.msra.mxu0 %v2204
        %2341 = vmatpush.bf16.msra.mxu0 %v2202
        %2342 = vmatpush.bf16.msra.mxu0 %v2200
        %2343 = vmatpush.bf16.msra.mxu0 %v2198
        %2344 = vmatpush.bf16.msra.mxu0 %v2196
        %2345 = vmatpush.bf16.msra.mxu0 %v2194
        %2346 = vmatmul.bf16.gmra.mxu0 %v1890
        %v2347 = vpop.f32.mrf.mxu0
        %v2348 = vadd.f32 %v2324, %v2347
        %v2349 = vpop.f32.mrf.mxu0
        %v2350 = vadd.f32 %v2326, %v2349
        %2351 = vmatmul.bf16.gmra.mxu0 %v1894
        %v2352 = vpop.f32.mrf.mxu0
        %v2353 = vadd.f32 %v2329, %v2352
        %v2354 = vpop.f32.mrf.mxu0
        %v2355 = vadd.f32 %v2331, %v2354
        %2356 = vmatmul.bf16.gmra.mxu0 %v1898
        %v2357 = vpop.f32.mrf.mxu0
        %v2358 = vadd.f32 %v2334, %v2357
        %v2359 = vpop.f32.mrf.mxu0
        %v2360 = vadd.f32 %v2336, %v2359
        %2361 = vdwg.mxu0
        %2362 = vmatpush.bf16.msra.mxu0 %v2224
        %2363 = vmatpush.bf16.msra.mxu0 %v2222
        %2364 = vmatpush.bf16.msra.mxu0 %v2220
        %2365 = vmatpush.bf16.msra.mxu0 %v2218
        %2366 = vmatpush.bf16.msra.mxu0 %v2216
        %2367 = vmatpush.bf16.msra.mxu0 %v2214
        %2368 = vmatpush.bf16.msra.mxu0 %v2212
        %2369 = vmatpush.bf16.msra.mxu0 %v2210
        %2370 = vmatmul.bf16.gmra.mxu0 %v1891
        %v2371 = vpop.f32.mrf.mxu0
        %v2372 = vadd.f32 %v2348, %v2371
        %v2373 = vpop.f32.mrf.mxu0
        %v2374 = vadd.f32 %v2350, %v2373
        %2375 = vmatmul.bf16.gmra.mxu0 %v1895
        %v2376 = vpop.f32.mrf.mxu0
        %v2377 = vadd.f32 %v2353, %v2376
        %v2378 = vpop.f32.mrf.mxu0
        %v2379 = vadd.f32 %v2355, %v2378
        %2380 = vmatmul.bf16.gmra.mxu0 %v1899
        %v2381 = vpop.f32.mrf.mxu0
        %v2382 = vadd.f32 %v2358, %v2381
        %v2383 = vpop.f32.mrf.mxu0
        %v2384 = vadd.f32 %v2360, %v2383
        %2385 = vdwg.mxu0
        %2386 = vmatpush.bf16.msra.mxu0 %v2177
        %2387 = vmatpush.bf16.msra.mxu0 %v2175
        %2388 = vmatpush.bf16.msra.mxu0 %v2173
        %2389 = vmatpush.bf16.msra.mxu0 %v2171
        %2390 = vmatpush.bf16.msra.mxu0 %v2169
        %2391 = vmatpush.bf16.msra.mxu0 %v2167
        %2392 = vmatpush.bf16.msra.mxu0 %v2165
        %2393 = vmatpush.bf16.msra.mxu0 %v2163
        %2394 = vmatmul.bf16.gmra.mxu0 %v1888
        %v2395 = vpop.f32.mrf.mxu0
        %v2396 = vadd.f32 %v1967, %v2395
        %v2397 = vpop.f32.mrf.mxu0
        %v2398 = vadd.f32 %v1967, %v2397
        %2399 = vmatmul.bf16.gmra.mxu0 %v1892
        %v2400 = vpop.f32.mrf.mxu0
        %v2401 = vadd.f32 %v1967, %v2400
        %v2402 = vpop.f32.mrf.mxu0
        %v2403 = vadd.f32 %v1967, %v2402
        %2404 = vmatmul.bf16.gmra.mxu0 %v1896
        %v2405 = vpop.f32.mrf.mxu0
        %v2406 = vadd.f32 %v1967, %v2405
        %v2407 = vpop.f32.mrf.mxu0
        %v2408 = vadd.f32 %v1967, %v2407
        %2409 = vdwg.mxu0
        %2410 = vmatpush.bf16.msra.mxu0 %v2193
        %2411 = vmatpush.bf16.msra.mxu0 %v2191
        %2412 = vmatpush.bf16.msra.mxu0 %v2189
        %2413 = vmatpush.bf16.msra.mxu0 %v2187
        %2414 = vmatpush.bf16.msra.mxu0 %v2185
        %2415 = vmatpush.bf16.msra.mxu0 %v2183
        %2416 = vmatpush.bf16.msra.mxu0 %v2181
        %2417 = vmatpush.bf16.msra.mxu0 %v2179
        %2418 = vmatmul.bf16.gmra.mxu0 %v1889
        %v2419 = vpop.f32.mrf.mxu0
        %v2420 = vadd.f32 %v2396, %v2419
        %v2421 = vpop.f32.mrf.mxu0
        %v2422 = vadd.f32 %v2398, %v2421
        %2423 = vmatmul.bf16.gmra.mxu0 %v1893
        %v2424 = vpop.f32.mrf.mxu0
        %v2425 = vadd.f32 %v2401, %v2424
        %v2426 = vpop.f32.mrf.mxu0
        %v2427 = vadd.f32 %v2403, %v2426
        %2428 = vmatmul.bf16.gmra.mxu0 %v1897
        %v2429 = vpop.f32.mrf.mxu0
        %v2430 = vadd.f32 %v2406, %v2429
        %v2431 = vpop.f32.mrf.mxu0
        %v2432 = vadd.f32 %v2408, %v2431
        %2433 = vdwg.mxu0
        %2434 = vmatpush.bf16.msra.mxu0 %v2209
        %2435 = vmatpush.bf16.msra.mxu0 %v2207
        %2436 = vmatpush.bf16.msra.mxu0 %v2205
        %2437 = vmatpush.bf16.msra.mxu0 %v2203
        %2438 = vmatpush.bf16.msra.mxu0 %v2201
        %2439 = vmatpush.bf16.msra.mxu0 %v2199
        %2440 = vmatpush.bf16.msra.mxu0 %v2197
        %2441 = vmatpush.bf16.msra.mxu0 %v2195
        %2442 = vmatmul.bf16.gmra.mxu0 %v1890
        %v2443 = vpop.f32.mrf.mxu0
        %v2444 = vadd.f32 %v2420, %v2443
        %v2445 = vpop.f32.mrf.mxu0
        %v2446 = vadd.f32 %v2422, %v2445
        %2447 = vmatmul.bf16.gmra.mxu0 %v1894
        %v2448 = vpop.f32.mrf.mxu0
        %v2449 = vadd.f32 %v2425, %v2448
        %v2450 = vpop.f32.mrf.mxu0
        %v2451 = vadd.f32 %v2427, %v2450
        %2452 = vmatmul.bf16.gmra.mxu0 %v1898
        %v2453 = vpop.f32.mrf.mxu0
        %v2454 = vadd.f32 %v2430, %v2453
        %v2455 = vpop.f32.mrf.mxu0
        %v2456 = vadd.f32 %v2432, %v2455
        %2457 = vdwg.mxu0
        %2458 = vmatpush.bf16.msra.mxu0 %v2225
        %2459 = vmatpush.bf16.msra.mxu0 %v2223
        %2460 = vmatpush.bf16.msra.mxu0 %v2221
        %2461 = vmatpush.bf16.msra.mxu0 %v2219
        %2462 = vmatpush.bf16.msra.mxu0 %v2217
        %2463 = vmatpush.bf16.msra.mxu0 %v2215
        %2464 = vmatpush.bf16.msra.mxu0 %v2213
        %2465 = vmatpush.bf16.msra.mxu0 %v2211
        %2466 = vmatmul.bf16.gmra.mxu0 %v1891
        %v2467 = vpop.f32.mrf.mxu0
        %v2468 = vadd.f32 %v2444, %v2467
        %v2469 = vpop.f32.mrf.mxu0
        %v2470 = vadd.f32 %v2446, %v2469
        %2471 = vmatmul.bf16.gmra.mxu0 %v1895
        %v2472 = vpop.f32.mrf.mxu0
        %v2473 = vadd.f32 %v2449, %v2472
        %v2474 = vpop.f32.mrf.mxu0
        %v2475 = vadd.f32 %v2451, %v2474
        %2476 = vmatmul.bf16.gmra.mxu0 %v1899
        %v2477 = vpop.f32.mrf.mxu0
        %v2478 = vadd.f32 %v2454, %v2477
        %v2479 = vpop.f32.mrf.mxu0
        %v2480 = vadd.f32 %v2456, %v2479
        %2481 = vdwg.mxu0
        %vm2482 = vcmp.gt.f32.partialorder %v2372, 0.0
        %vm2483 = vcmp.gt.f32.partialorder %v2468, 0.0
        %vm2484 = vcmp.gt.f32.partialorder %v2374, 0.0
        %vm2485 = vcmp.gt.f32.partialorder %v2470, 0.0
        %vm2486 = vcmp.gt.f32.partialorder %v2377, 0.0
        %vm2487 = vcmp.gt.f32.partialorder %v2473, 0.0
        %vm2488 = vcmp.gt.f32.partialorder %v2379, 0.0
        %vm2489 = vcmp.gt.f32.partialorder %v2475, 0.0
        %vm2490 = vcmp.gt.f32.partialorder %v2382, 0.0
        %vm2491 = vcmp.gt.f32.partialorder %v2478, 0.0
        %vm2492 = vcmp.gt.f32.partialorder %v2384, 0.0
        %vm2493 = vcmp.gt.f32.partialorder %v2480, 0.0
        %v2494 = vmul.f32 %v2372, 0.2
        %v2495 = vmul.f32 %v2468, 0.2
        %v2496 = vmul.f32 %v2374, 0.2
        %v2497 = vmul.f32 %v2470, 0.2
        %v2498 = vmul.f32 %v2377, 0.2
        %v2499 = vmul.f32 %v2473, 0.2
        %v2500 = vmul.f32 %v2379, 0.2
        %v2501 = vmul.f32 %v2475, 0.2
        %v2502 = vmul.f32 %v2382, 0.2
        %v2503 = vmul.f32 %v2478, 0.2
        %v2504 = vmul.f32 %v2384, 0.2
        %v2505 = vmul.f32 %v2480, 0.2
        %v2506 = vsel %vm2482, %v2372, %v2494
        %v2507 = vsel %vm2483, %v2468, %v2495
        %v2508 = vsel %vm2484, %v2374, %v2496
        %v2509 = vsel %vm2485, %v2470, %v2497
        %v2510 = vsel %vm2486, %v2377, %v2498
        %v2511 = vsel %vm2487, %v2473, %v2499
        %v2512 = vsel %vm2488, %v2379, %v2500
        %v2513 = vsel %vm2489, %v2475, %v2501
        %v2514 = vsel %vm2490, %v2382, %v2502
        %v2515 = vsel %vm2491, %v2478, %v2503
        %v2516 = vsel %vm2492, %v2384, %v2504
        %v2517 = vsel %vm2493, %v2480, %v2505
        %v2518 = vld [vmem:[%s7] sm:$0x3]
        %v2520 = vperm.slane %v2518, 0
        %v2521 = vperm.slane %v2518, 1
        %v2524 = vmul.f32 %v2506, %v2520
        %v2525 = vmul.f32 %v2507, %v2521
        %v2526 = vmul.f32 %v2508, %v2520
        %v2527 = vmul.f32 %v2509, %v2521
        %v2528 = vmul.f32 %v2510, %v2520
        %v2529 = vmul.f32 %v2511, %v2521
        %v2530 = vmul.f32 %v2512, %v2520
        %v2531 = vmul.f32 %v2513, %v2521
        %v2532 = vmul.f32 %v2514, %v2520
        %v2533 = vmul.f32 %v2515, %v2521
        %v2534 = vmul.f32 %v2516, %v2520
        %v2535 = vmul.f32 %v2517, %v2521
        %v2536 = vadd.f32 %v2524, %v2525
        %2537 = vadd.xlane.f32.xlu0 %v2536
        %v2538 = vpop.xlane.xlu0 %2537
        %v2539 = vadd.f32 %v2526, %v2527
        %2540 = vadd.xlane.f32.xlu0 %v2539
        %v2541 = vpop.xlane.xlu0 %2540
        %v2542 = vadd.f32 %v2528, %v2529
        %2543 = vadd.xlane.f32.xlu0 %v2542
        %v2544 = vpop.xlane.xlu0 %2543
        %v2545 = vadd.f32 %v2530, %v2531
        %2546 = vadd.xlane.f32.xlu0 %v2545
        %v2547 = vpop.xlane.xlu0 %2546
        %v2548 = vadd.f32 %v2532, %v2533
        %2549 = vadd.xlane.f32.xlu0 %v2548
        %v2550 = vpop.xlane.xlu0 %2549
        %v2551 = vadd.f32 %v2534, %v2535
        %2552 = vadd.xlane.f32.xlu0 %v2551
        %v2553 = vpop.xlane.xlu0 %2552
        %v2554 = vld [vmem:[#allocation2] sm:$0x1]
        %v2556 = vperm.slane %v2554, 0
        %v2558 = vadd.f32 %v2538, %v2556
        %v2559 = vadd.f32 %v2541, %v2556
        %v2560 = vadd.f32 %v2544, %v2556
        %v2561 = vadd.f32 %v2547, %v2556
        %v2562 = vadd.f32 %v2550, %v2556
        %v2563 = vadd.f32 %v2553, %v2556
        %vm2564 = vcmask 7168
        %2565 = vst.msk [vmem:[%s370] sm:$0xff] %vm2564, %v2558
        %2566 = vst.msk [vmem:[%s370 + $0x8] sm:$0xff] %vm2564, %v2559
        %2567 = vst.msk [vmem:[%s370 + $0x10] sm:$0xff] %vm2564, %v2560
        %2568 = vst.msk [vmem:[%s370 + $0x18] sm:$0xff] %vm2564, %v2561
        %2569 = vst.msk [vmem:[%s370 + $0x20] sm:$0xff] %vm2564, %v2562
        %2570 = vst.msk [vmem:[%s370 + $0x28] sm:$0xff] %vm2564, %v2563
        %s2571 = smul.u32 6, %s24
        %p2572 = scmp.lt.s32.totalorder %s2571, 11
        %s2573 = scalar_select %p2572, %s2571, 11
        %s2574 = smul.addr %s2573, 8
        %s2575 = scalar_lea.vmem %s9, %s2574
        // Predicated region
        $region65: #{deeper_discriminator.1} parent=55 // pred_check
          %p2576 = pneg %p236
        $region66: #{deeper_discriminator.1} parent=55 // pred_check_branch
          %2578 = sbr.rel (%p2576) target = $region68
        $region67: #{deeper_discriminator.1} parent=55 // pred_region
          %s2579 = smul.u32 6, %s24
        $region68: #{deeper_discriminator.1} parent=55 // pred_fallthru
          _
      $region56: #{deeper_discriminator.1} parent=5 // pred_fallthru
        _
      %p2580 = scmp.le.s32.totalorder 2, %s19
      // Predicated region
      $region69: #{deeper_discriminator.1} parent=5 // pred_check
        %p2581 = pneg %p2580
      $region70: #{deeper_discriminator.1} parent=5 // pred_check_branch
        %2583 = sbr.rel (%p2581) target = $region72
      $region71: #{deeper_discriminator.1} parent=5 // pred_region
        %s2584 = ssub.s32 %s19, 2
        // Predicated region
        $region73: #{deeper_discriminator.1} parent=71 // pred_check
          %p2585 = pneg %p242
        $region74: #{deeper_discriminator.1} parent=71 // pred_check_branch
          %2587 = sbr.rel (%p2585) target = $region76
        $region75: #{deeper_discriminator.1} parent=71 // pred_region
          %s2588 = smul.u32 6, %s25
          %p2589 = scmp.lt.s32.totalorder %s2588, 11
          %s2590 = scalar_select %p2589, %s2588, 11
          %s2591 = smul.addr %s2590, 8
          %s2592 = scalar_lea.vmem %s9, %s2591
        $region76: #{deeper_discriminator.1} parent=71 // pred_fallthru
          _
      $region72: #{deeper_discriminator.1} parent=5 // pred_fallthru
        _
    $region6: #{deeper_discriminator.1} parent=1 // loop_footer
      %s23 = sadd.s32 1, %s19
    $region7: #{deeper_discriminator.1} parent=1 // loop_footer_branch
      %18 = sbr.rel target = $region3
    $region8: #{deeper_discriminator.1} parent=1 // loop_exit
      _
    %2593 = vsyncpa [#allocation4], 1
    %s2594 = scalar_lea.sflag [#allocation4], 1
    %2595 = vsyncpa %s2594, 1
    %2596 = vsyncpa [#allocation6], 1

</llo_original>
